<compile_context>
chip_gen: v6e
topology: v6e:2x2x1
jax: 0.10.0
libtpu: 0.0.40
codegen_flags: <defaults>
</compile_context>

<pallas_src>
import functools
import math

import jax
import jax.numpy as jnp
from jax import lax
from jax.experimental import pallas as pl
from jax.experimental.pallas import tpu as pltpu


# ---------------------------------------------------------------------------
# Plain-JAX glue: geometry helpers (EquirecGrid / EquirecTransformer / pose).
# TODO(synk): BiFusev2's Conversion/Projection sources are not provided; we use
# standard equirectangular conventions (lon = atan2(x, z), lat = asin(y/|xyz|),
# linspace angle grid consistent with grid_sample(align_corners=True)) and a
# [tx,ty,tz,rx,ry,rz] euler pose vector.
# ---------------------------------------------------------------------------
def pose_vec_to_mat(pose):
    """(B, F, 6) -> (B, F, 4, 4) rigid transform."""
    t = pose[..., :3]
    rx, ry, rz = pose[..., 3], pose[..., 4], pose[..., 5]
    cx, sx = jnp.cos(rx), jnp.sin(rx)
    cy, sy = jnp.cos(ry), jnp.sin(ry)
    cz, sz = jnp.cos(rz), jnp.sin(rz)
    zeros, ones = jnp.zeros_like(rx), jnp.ones_like(rx)
    Rx = jnp.stack([ones, zeros, zeros,
                    zeros, cx, -sx,
                    zeros, sx, cx], -1).reshape(rx.shape + (3, 3))
    Ry = jnp.stack([cy, zeros, sy,
                    zeros, ones, zeros,
                    -sy, zeros, cy], -1).reshape(ry.shape + (3, 3))
    Rz = jnp.stack([cz, -sz, zeros,
                    sz, cz, zeros,
                    zeros, zeros, ones], -1).reshape(rz.shape + (3, 3))
    R = Rz @ Ry @ Rx
    top = jnp.concatenate([R, t[..., None]], axis=-1)                 # (B,F,3,4)
    bot = jnp.broadcast_to(jnp.array([0., 0., 0., 1.], jnp.float32),
                           top.shape[:-2] + (1, 4))
    return jnp.concatenate([top, bot], axis=-2)                       # (B,F,4,4)


def area_downsample(x, h, w):
    """F.interpolate(mode='area') for integer downscale factors. x: (B,C,H,W)."""
    B, C, H, W = x.shape
    sh, sw = H // h, W // w
    return x.reshape(B, C, h, sh, w, sw).mean(axis=(3, 5))


def equirect_dirs(h, w):
    """Unit ray direction per pixel: (3, h*w), flattened row-major over (h, w)."""
    lon = jnp.linspace(-math.pi, math.pi, w, dtype=jnp.float32)
    lat = jnp.linspace(-0.5 * math.pi, 0.5 * math.pi, h, dtype=jnp.float32)
    lat_g, lon_g = jnp.meshgrid(lat, lon, indexing="ij")
    dx = jnp.cos(lat_g) * jnp.sin(lon_g)
    dy = jnp.sin(lat_g)
    dz = jnp.cos(lat_g) * jnp.cos(lon_g)
    return jnp.stack([dx, dy, dz], axis=0).reshape(3, h * w)


# ---------------------------------------------------------------------------
# In-kernel math helper.
# ---------------------------------------------------------------------------
def _atan2(y, x):
    """atan2 built only from mul/add/div/sqrt/select (Mosaic-safe), |err| < 1e-7.

    Construction guarantees |result| <= pi (and <= pi/2 when x >= 0), so the
    un-normalized grid coords below always land inside [0, w-1] x [0, h-1].
    """
    abs_y, abs_x = jnp.abs(y), jnp.abs(x)
    big = jnp.maximum(abs_x, abs_y)
    small = jnp.minimum(abs_x, abs_y)
    t = small / jnp.maximum(big, 1e-30)                 # in [0, 1]
    # two half-angle reductions, then a short odd Taylor series
    t1 = t / (1.0 + jnp.sqrt(1.0 + t * t))
    t2 = t1 / (1.0 + jnp.sqrt(1.0 + t1 * t1))
    u = t2 * t2
    a = t2 * (1.0 + u * (-1.0 / 3.0 + u * (1.0 / 5.0 + u * (-1.0 / 7.0 + u * (1.0 / 9.0)))))
    r = 4.0 * a
    r = jnp.where(abs_y > abs_x, 0.5 * math.pi - r, r)
    r = jnp.where(x < 0.0, math.pi - r, r)
    return jnp.where(y < 0.0, -r, r)


# ---------------------------------------------------------------------------
# The Pallas kernel: grid = (B, F, num_query_blocks).
#   depth * (R @ dir) + t -> lon/lat -> grid coords -> bilinear warp as a
#   weighted 4-hot hit by a single bf16 MXU matmul per source chunk ->
#   masked L1 -> per-(b, f) accumulated partial loss.
# ---------------------------------------------------------------------------
def _photometric_kernel(par_ref, ref_ref, depth_ref, mask_ref, tgt_ref, dirs_ref,
                        out_ref, *, h, w, nk, ks_size, inv_den):
    b = pl.program_id(0)
    f = pl.program_id(1)

    @pl.when(pl.program_id(2) == 0)
    def _init():
        out_ref[...] = jnp.zeros_like(out_ref)

    TQ = depth_ref.shape[-1]

    # ---- rotate the static rays in-kernel:  c = depth * (R @ dir) + t
    dirs = dirs_ref[...]                               # (3, TQ) f32
    dxv, dyv, dzv = dirs[0:1, :], dirs[1:2, :], dirs[2:3, :]
    d = depth_ref[0]                                   # (1, TQ)
    cx = (par_ref[b, f, 3] * dxv + par_ref[b, f, 4] * dyv
          + par_ref[b, f, 5] * dzv) * d + par_ref[b, f, 0]
    cy = (par_ref[b, f, 6] * dxv + par_ref[b, f, 7] * dyv
          + par_ref[b, f, 8] * dzv) * d + par_ref[b, f, 1]
    cz = (par_ref[b, f, 9] * dxv + par_ref[b, f, 10] * dyv
          + par_ref[b, f, 11] * dzv) * d + par_ref[b, f, 2]

    lon = _atan2(cx, cz)
    lat = _atan2(cy, jnp.sqrt(cx * cx + cz * cz))      # == asin(y/|xyz|), "clipped"

    # grid_sample(align_corners=True) un-normalization: X = lon/pi, Y = lat/(pi/2)
    gx = (lon * (1.0 / math.pi) + 1.0) * (0.5 * (w - 1))
    gy = (lat * (2.0 / math.pi) + 1.0) * (0.5 * (h - 1))

    x0f = jnp.floor(gx)
    y0f = jnp.floor(gy)
    wx = gx - x0f
    wy = gy - y0f
    x0 = x0f.astype(jnp.int32)
    y0 = y0f.astype(jnp.int32)

    # separable zero-padding validity per query column, (1, TQ)
    vx0 = ((x0 >= 0) & (x0 <= w - 1)).astype(jnp.float32)
    vx1 = ((x0 >= -1) & (x0 <= w - 2)).astype(jnp.float32)
    vy0 = ((y0 >= 0) & (y0 <= h - 1)).astype(jnp.float32)
    vy1 = ((y0 >= -1) & (y0 <= h - 2)).astype(jnp.float32)

    cw0 = (1.0 - wx) * (1.0 - wy) * vx0 * vy0          # corner (x0  , y0  )
    cw1 = wx * (1.0 - wy) * vx1 * vy0                  # corner (x0+1, y0  )
    cw2 = (1.0 - wx) * wy * vx0 * vy1                  # corner (x0  , y0+1)
    cw3 = wx * wy * vx1 * vy1                          # corner (x0+1, y0+1)

    idx = y0 * w + x0                                  # (1, TQ) flat source index

    # Weighted 4-hot sampling matrix, one bf16 MXU matmul per source chunk.
    # The four flat corner indices are distinct (w >= 2), so the nested where
    # is exact; invalid / x-wrapped corners carry zero weight.
    # TODO(synk): for very large P (>> 64K) a scalar-prefetch / DMA-gather
    # formulation should replace this O(P*TQ) sampling matrix.
    warp = jnp.zeros((3, TQ), jnp.float32)
    for kblk in range(nk):                             # static unroll; nk = P // KS
        koff = kblk * ks_size
        si = lax.broadcasted_iota(jnp.int32, (ks_size, 1), 0) + koff   # (KS, 1)
        fourhot = jnp.where(
            si == idx, cw0,
            jnp.where(si == idx + 1, cw1,
                      jnp.where(si == idx + w, cw2,
                                jnp.where(si == idx + (w + 1), cw3, 0.0))))
        fourhot = fourhot.astype(jnp.bfloat16)                         # (KS, TQ)
        tgt_k = tgt_ref[0, 0, :, koff:koff + ks_size]                  # (3, KS) bf16
        warp = warp + jnp.dot(tgt_k, fourhot,
                              preferred_element_type=jnp.float32)      # (3, TQ)

    diff = jnp.abs(ref_ref[0] - warp) * mask_ref[0, 0]                 # (3, TQ)
    out_ref[...] += jnp.sum(diff) * inv_den


# ---------------------------------------------------------------------------
# Per-generation tiling / VMEM budget.
# ---------------------------------------------------------------------------
def _tpu_vmem_bytes():
    try:
        return int(pltpu.get_tpu_info().vmem_capacity_bytes)
    except Exception:
        return 64 * 1024 * 1024          # conservative (v7x per-core) fallback


def _tiling(P):
    """Query-tile TQ, source-chunk KS, and VMEM cap for this TPU generation."""
    vmem = _tpu_vmem_bytes()
    if vmem >= 96 * 1024 * 1024:         # v5e / v6e: 128 MiB physical VMEM
        tq_pref, ks_pref, cap = 512, 4096, 100 * 1024 * 1024
    else:                                # v7x: 64 MiB per-core VMEM
        tq_pref, ks_pref, cap = 256, 2048, 44 * 1024 * 1024
    tq = P                               # fallback: one query block (odd sizes)
    for c in (1024, 512, 256, 128):
        if c <= tq_pref and P % c == 0:
            tq = c
            break
    ks = P                               # fallback: single source chunk
    for c in (8192, 4096, 2048, 1024, 512, 256, 128):
        if c <= ks_pref and P % c == 0:
            ks = c
            break
    return tq, ks, cap


def _vmem_limit_bytes(P, TQ, KS, cap):
    # double-buffered input blocks + resident output + per-chunk temporaries,
    # with 2x headroom; never below the 32 MiB default scoped limit.
    blocks = 2 * 4 * (3 * TQ + TQ + TQ + 3 * TQ) + 2 * 2 * 3 * P + 4 * 8 * 128
    temps = KS * TQ * (3 * 4 + 2) + 4 * (64 * TQ + 3 * TQ)
    est = 2 * (blocks + temps)
    return int(min(cap, max(32 * 1024 * 1024, est)))


# ---------------------------------------------------------------------------
# Per-scale loss: Pallas path and tiny-scale XLA fallback.
# ---------------------------------------------------------------------------
def _scale_loss_pallas(params, ref_s, depth, mask, tgts_s):
    """params (B,F,12), ref_s (B,3,h,w), depth (B,1,h,w), mask (B,F,h,w),
    tgts_s (F,B,3,h,w)."""
    B, _, h, w = depth.shape
    F_ = mask.shape[1]
    P = h * w
    TQ, KS, cap = _tiling(P)
    NQ = P // TQ
    nk = P // KS

    ref_p = ref_s.reshape(B, 3, P).astype(jnp.float32)
    depth_flat = depth.reshape(B, 1, P).astype(jnp.float32)
    mask_flat = mask.reshape(B, F_, 1, P).astype(jnp.float32)
    tgt = jnp.transpose(tgts_s, (1, 0, 2, 3, 4)).reshape(B, F_, 3, P)
    tgt = tgt.astype(jnp.bfloat16)                       # bf16 target in HBM
    dirs = equirect_dirs(h, w)                           # (3, P) shared over b, f

    inv_den = 1.0 / (B * 3 * h * w)
    kernel = functools.partial(_photometric_kernel, h=h, w=w, nk=nk,
                               ks_size=KS, inv_den=inv_den)

    grid_spec = pltpu.PrefetchScalarGridSpec(
        num_scalar_prefetch=1,                           # (B, F, 12) pose params -> SMEM
        grid=(B, F_, NQ),
        in_specs=[
            pl.BlockSpec((1, 3, TQ), lambda b, f, q, p: (b, 0, q)),
            pl.BlockSpec((1, 1, TQ), lambda b, f, q, p: (b, 0, q)),
            pl.BlockSpec((1, 1, 1, TQ), lambda b, f, q, p: (b, f, 0, q)),
            pl.BlockSpec((1, 1, 3, P), lambda b, f, q, p: (b, f, 0, 0)),
            pl.BlockSpec((3, TQ), lambda b, f, q, p: (0, q)),
        ],
        out_specs=pl.BlockSpec((1, 1, 8, 128), lambda b, f, q, p: (b, f, 0, 0)),
    )
    out = pl.pallas_call(
        kernel,
        out_shape=jax.ShapeDtypeStruct((B, F_, 8, 128), jnp.float32),
        grid_spec=grid_spec,
        compiler_params=pltpu.CompilerParams(
            dimension_semantics=("parallel", "parallel", "arbitrary"),
            vmem_limit_bytes=_vmem_limit_bytes(P, TQ, KS, cap)),
    )(params, ref_p, depth_flat, mask_flat, tgt, dirs)
    # per-(b, f) partial losses (replicated across the 8x128 lane-dense block)
    return jnp.sum(out[:, :, 0, 0])


def _grid_sample_ref(img, gx, gy):
    B, C, h, w = img.shape
    x0 = jnp.floor(gx).astype(jnp.int32)
    y0 = jnp.floor(gy).astype(jnp.int32)
    wx1 = gx - jnp.floor(gx)
    wy1 = gy - jnp.floor(gy)
    img_flat = img.reshape(B, C, h * w)
    out = jnp.zeros((B, C, h, w), img.dtype)
    for dx, wwx in ((0, 1.0 - wx1), (1, wx1)):
        for dy, wwy in ((0, 1.0 - wy1), (1, wy1)):
            xi, yi = x0 + dx, y0 + dy
            valid = ((xi >= 0) & (xi < w) & (yi >= 0) & (yi < h)).astype(img.dtype)
            idx = jnp.clip(yi, 0, h - 1) * w + jnp.clip(xi, 0, w - 1)
            idx = jnp.broadcast_to(idx.reshape(B, 1, h * w), (B, C, h * w))
            v = jnp.take_along_axis(img_flat, idx, axis=2).reshape(B, C, h, w)
            out = out + (wwx * wwy * valid)[:, None] * v
    return out


def _scale_loss_xla(R, tvec, ref_s, depth, mask, tgts_s):
    """Plain-XLA gather path for tiny pyramid scales (grid overhead dominates)."""
    B, _, h, w = depth.shape
    F_ = mask.shape[1]
    dirs = equirect_dirs(h, w).reshape(3, h, w)
    loss = jnp.float32(0.0)
    xyz = depth[:, 0][:, None] * dirs[None]                          # (B,3,h,w)
    for f in range(F_):
        cam = jnp.einsum("bij,bjhw->bihw", R[:, f], xyz) + tvec[:, f][:, :, None, None]
        x, y, z = cam[:, 0], cam[:, 1], cam[:, 2]
        lon = jnp.arctan2(x, z)
        lat = jnp.arctan2(y, jnp.sqrt(x * x + z * z))
        gx = (lon / math.pi + 1.0) * 0.5 * (w - 1)
        gy = (lat / (0.5 * math.pi) + 1.0) * 0.5 * (h - 1)
        warped = _grid_sample_ref(tgts_s[f], gx, gy)
        loss = loss + jnp.mean(mask[:, f:f + 1] * jnp.abs(ref_s - warped))
    return loss


def base_photometric_forward(ref_rgb, ref_depth_lst, exp_mask_lst, tgts_rgb, pose,
                             *, min_pallas_pixels=4096):
    """Pallas port of BasePhotometric.forward. Returns (loss, None)."""
    Rt = pose_vec_to_mat(pose)                                       # (B, F, 4, 4)
    R = Rt[..., :3, :3]                                              # (B, F, 3, 3)
    tvec = Rt[..., :3, 3]                                            # (B, F, 3)
    params = jnp.concatenate(
        [tvec, R.reshape(R.shape[:-2] + (9,))], axis=-1).astype(jnp.float32)  # (B,F,12)
    tgts = jnp.stack(tgts_rgb, axis=0)                               # (F, B, 3, H, W)
    Fr, B, C, H, W = tgts.shape
    loss = jnp.float32(0.0)
    for depth, mask in zip(ref_depth_lst, exp_mask_lst):
        h, w = depth.shape[-2:]
        ref_s = area_downsample(ref_rgb, h, w)
        tgts_s = area_downsample(tgts.reshape(Fr * B, C, H, W), h, w)
        tgts_s = tgts_s.reshape(Fr, B, C, h, w)
        if h * w < min_pallas_pixels:
            loss = loss + _scale_loss_xla(R, tvec, ref_s, depth, mask, tgts_s)
        else:
            loss = loss + _scale_loss_pallas(params, ref_s, depth, mask, tgts_s)
    return loss, None


# ---------------------------------------------------------------------------
# Pure-JAX reference (no Pallas) for a correctness sanity check.
# ---------------------------------------------------------------------------
def base_photometric_reference(ref_rgb, ref_depth_lst, exp_mask_lst, tgts_rgb, pose):
    Rt = pose_vec_to_mat(pose)
    loss = 0.0
    for depth, mask in zip(ref_depth_lst, exp_mask_lst):
        B, _, h, w = depth.shape
        ref_s = area_downsample(ref_rgb, h, w)
        tgts_s = [area_downsample(t, h, w) for t in tgts_rgb]
        dirs = jnp.moveaxis(equirect_dirs(h, w).reshape(3, h, w), 0, -1)    # (h,w,3)
        xyz = depth[:, 0, :, :, None] * dirs[None]                          # (B,h,w,3)
        pts = jnp.concatenate([xyz, jnp.ones_like(xyz[..., :1])], axis=-1)  # (B,h,w,4)
        cam = jnp.einsum("bfij,bhwj->bhwfi", Rt, pts)                       # (B,h,w,F,4)
        x, y, z = cam[..., 0], cam[..., 1], cam[..., 2]
        lon = jnp.arctan2(x, z)
        lat = jnp.arctan2(y, jnp.sqrt(x * x + z * z))
        gx = (lon / math.pi + 1.0) * 0.5 * (w - 1)
        gy = (lat / (0.5 * math.pi) + 1.0) * 0.5 * (h - 1)
        for f in range(len(tgts_rgb)):
            warped = _grid_sample_ref(tgts_s[f], gx[..., f], gy[..., f])
            diff = jnp.abs(ref_s - warped)
            loss = loss + jnp.mean(mask[:, f:f + 1] * diff)
    return loss


if __name__ == "__main__":
    key = jax.random.PRNGKey(0)
    B, Fr, H, W = 2, 2, 16, 32                  # 2 scales: (16,32) and (8,16)
    ks = jax.random.split(key, 8)
    ref_rgb = jax.random.uniform(ks[0], (B, 3, H, W), jnp.float32)
    tgts_rgb = [jax.random.uniform(ks[1 + i], (B, 3, H, W), jnp.float32) for i in range(Fr)]
    ref_depth_lst = [1.0 + jax.random.uniform(ks[3], (B, 1, H, W), jnp.float32),
                     1.0 + jax.random.uniform(ks[4], (B, 1, H // 2, W // 2), jnp.float32)]
    exp_mask_lst = [jax.random.uniform(ks[5], (B, Fr, H, W), jnp.float32),
                    jax.random.uniform(ks[6], (B, Fr, H // 2, W // 2), jnp.float32)]
    pose = 0.1 * jax.random.normal(ks[7], (B, Fr, 6), jnp.float32)

    # min_pallas_pixels=0: exercise the Pallas kernel even at these toy sizes.
    loss, _ = base_photometric_forward(ref_rgb, ref_depth_lst, exp_mask_lst, tgts_rgb,
                                       pose, min_pallas_pixels=0)
    loss = jax.block_until_ready(loss)

    loss_ref = jax.block_until_ready(
        base_photometric_reference(ref_rgb, ref_depth_lst, exp_mask_lst, tgts_rgb, pose))
    # tolerance loosened vs. the pure-f32 version: the target & sampling matrix
    # are bf16 on the MXU now (fine for an L1 photometric loss).
    err = abs(float(loss) - float(loss_ref))
    assert err < 5e-3 + 1e-2 * abs(float(loss_ref)), (float(loss), float(loss_ref))
    print("KERNEL_OK")
</pallas_src>

<mosaic_0001>
module attributes {stable_mosaic.version = 11 : i64} {
  func.func @_photometric_kernel(%arg0: i32, %arg1: i32, %arg2: i32, %arg3: memref<2x2x12xf32, #tpu.memory_space<smem>>, %arg4: memref<1x3x256xf32, #tpu.memory_space<vmem>>, %arg5: memref<1x1x256xf32, #tpu.memory_space<vmem>>, %arg6: memref<1x1x1x256xf32, #tpu.memory_space<vmem>>, %arg7: memref<1x1x3x512xbf16, #tpu.memory_space<vmem>>, %arg8: memref<3x256xf32, #tpu.memory_space<vmem>>, %arg9: memref<1x1x8x128xf32, #tpu.memory_space<vmem>>) attributes {dimension_semantics = [#tpu.dimension_semantics<parallel>, #tpu.dimension_semantics<parallel>, #tpu.dimension_semantics<arbitrary>], iteration_bounds = array<i64: 2, 2, 2>, scalar_prefetch = 1 : i64, scratch_operands = 0 : i64, tpu.core_type = #tpu.core_type<tc>, window_params = [{transform_indices = @transform_0, window_bounds = array<i64: 1, 3, 256>}, {transform_indices = @transform_1, window_bounds = array<i64: 1, 1, 256>}, {transform_indices = @transform_2, window_bounds = array<i64: 1, 1, 1, 256>}, {transform_indices = @transform_3, window_bounds = array<i64: 1, 1, 3, 512>}, {transform_indices = @transform_4, window_bounds = array<i64: 3, 256>}, {transform_indices = @transform_5, window_bounds = array<i64: 1, 1, 8, 128>}]} {
    %c0_i32 = arith.constant 0 : i32
    %0 = arith.cmpi eq, %arg2, %c0_i32 : i32
    %1 = arith.extui %0 : i1 to i32
    %c0_i32_0 = arith.constant 0 : i32
    %2 = arith.cmpi ne, %1, %c0_i32_0 : i32
    scf.if %2 {
      %cst_76 = arith.constant 0.000000e+00 : f32
      %312 = vector.broadcast %cst_76 : f32 to vector<1x1x8x128xf32>
      %c0_77 = arith.constant 0 : index
      %c0_78 = arith.constant 0 : index
      %c0_79 = arith.constant 0 : index
      %c0_80 = arith.constant 0 : index
      %313 = vector.load %arg9[%c0_77, %c0_78, %c0_79, %c0_80] : memref<1x1x8x128xf32, #tpu.memory_space<vmem>>, vector<1x1x8x128xf32>
      tpu.vector_store %arg9[%c0_77, %c0_78, %c0_79, %c0_80], %312 {strides = array<i32>} : memref<1x1x8x128xf32, #tpu.memory_space<vmem>>, vector<1x1x8x128xf32>,
    } else {
    }
    %c0 = arith.constant 0 : index
    %c0_1 = arith.constant 0 : index
    %3 = vector.load %arg8[%c0, %c0_1] : memref<3x256xf32, #tpu.memory_space<vmem>>, vector<3x256xf32>
    %4 = vector.extract_strided_slice %3 {offsets = [0, 0], sizes = [1, 256], strides = [1, 1]} : vector<3x256xf32> to vector<1x256xf32>
    %5 = vector.extract_strided_slice %3 {offsets = [1, 0], sizes = [1, 256], strides = [1, 1]} : vector<3x256xf32> to vector<1x256xf32>
    %6 = vector.extract_strided_slice %3 {offsets = [2, 0], sizes = [1, 256], strides = [1, 1]} : vector<3x256xf32> to vector<1x256xf32>
    %c0_2 = arith.constant 0 : index
    %c0_3 = arith.constant 0 : index
    %c0_4 = arith.constant 0 : index
    %7 = vector.load %arg5[%c0_2, %c0_3, %c0_4] : memref<1x1x256xf32, #tpu.memory_space<vmem>>, vector<1x1x256xf32>
    %8 = vector.shape_cast %7 : vector<1x1x256xf32> to vector<1x256xf32>
    %9 = arith.index_cast %arg0 : i32 to index
    %10 = arith.index_cast %arg1 : i32 to index
    %c3 = arith.constant 3 : index
    %11 = memref.load %arg3[%9, %10, %c3] : memref<2x2x12xf32, #tpu.memory_space<smem>>
    %12 = vector.broadcast %11 : f32 to vector<1x256xf32>
    %13 = arith.mulf %12, %4 : vector<1x256xf32>
    %14 = arith.index_cast %arg0 : i32 to index
    %15 = arith.index_cast %arg1 : i32 to index
    %c4 = arith.constant 4 : index
    %16 = memref.load %arg3[%14, %15, %c4] : memref<2x2x12xf32, #tpu.memory_space<smem>>
    %17 = vector.broadcast %16 : f32 to vector<1x256xf32>
    %18 = arith.mulf %17, %5 : vector<1x256xf32>
    %19 = arith.addf %13, %18 : vector<1x256xf32>
    %20 = arith.index_cast %arg0 : i32 to index
    %21 = arith.index_cast %arg1 : i32 to index
    %c5 = arith.constant 5 : index
    %22 = memref.load %arg3[%20, %21, %c5] : memref<2x2x12xf32, #tpu.memory_space<smem>>
    %23 = vector.broadcast %22 : f32 to vector<1x256xf32>
    %24 = arith.mulf %23, %6 : vector<1x256xf32>
    %25 = arith.addf %19, %24 : vector<1x256xf32>
    %26 = arith.mulf %25, %8 : vector<1x256xf32>
    %27 = arith.index_cast %arg0 : i32 to index
    %28 = arith.index_cast %arg1 : i32 to index
    %c0_5 = arith.constant 0 : index
    %29 = memref.load %arg3[%27, %28, %c0_5] : memref<2x2x12xf32, #tpu.memory_space<smem>>
    %30 = vector.broadcast %29 : f32 to vector<1x256xf32>
    %31 = arith.addf %26, %30 : vector<1x256xf32>
    %32 = arith.index_cast %arg0 : i32 to index
    %33 = arith.index_cast %arg1 : i32 to index
    %c6 = arith.constant 6 : index
    %34 = memref.load %arg3[%32, %33, %c6] : memref<2x2x12xf32, #tpu.memory_space<smem>>
    %35 = vector.broadcast %34 : f32 to vector<1x256xf32>
    %36 = arith.mulf %35, %4 : vector<1x256xf32>
    %37 = arith.index_cast %arg0 : i32 to index
    %38 = arith.index_cast %arg1 : i32 to index
    %c7 = arith.constant 7 : index
    %39 = memref.load %arg3[%37, %38, %c7] : memref<2x2x12xf32, #tpu.memory_space<smem>>
    %40 = vector.broadcast %39 : f32 to vector<1x256xf32>
    %41 = arith.mulf %40, %5 : vector<1x256xf32>
    %42 = arith.addf %36, %41 : vector<1x256xf32>
    %43 = arith.index_cast %arg0 : i32 to index
    %44 = arith.index_cast %arg1 : i32 to index
    %c8 = arith.constant 8 : index
    %45 = memref.load %arg3[%43, %44, %c8] : memref<2x2x12xf32, #tpu.memory_space<smem>>
    %46 = vector.broadcast %45 : f32 to vector<1x256xf32>
    %47 = arith.mulf %46, %6 : vector<1x256xf32>
    %48 = arith.addf %42, %47 : vector<1x256xf32>
    %49 = arith.mulf %48, %8 : vector<1x256xf32>
    %50 = arith.index_cast %arg0 : i32 to index
    %51 = arith.index_cast %arg1 : i32 to index
    %c1 = arith.constant 1 : index
    %52 = memref.load %arg3[%50, %51, %c1] : memref<2x2x12xf32, #tpu.memory_space<smem>>
    %53 = vector.broadcast %52 : f32 to vector<1x256xf32>
    %54 = arith.addf %49, %53 : vector<1x256xf32>
    %55 = arith.index_cast %arg0 : i32 to index
    %56 = arith.index_cast %arg1 : i32 to index
    %c9 = arith.constant 9 : index
    %57 = memref.load %arg3[%55, %56, %c9] : memref<2x2x12xf32, #tpu.memory_space<smem>>
    %58 = vector.broadcast %57 : f32 to vector<1x256xf32>
    %59 = arith.mulf %58, %4 : vector<1x256xf32>
    %60 = arith.index_cast %arg0 : i32 to index
    %61 = arith.index_cast %arg1 : i32 to index
    %c10 = arith.constant 10 : index
    %62 = memref.load %arg3[%60, %61, %c10] : memref<2x2x12xf32, #tpu.memory_space<smem>>
    %63 = vector.broadcast %62 : f32 to vector<1x256xf32>
    %64 = arith.mulf %63, %5 : vector<1x256xf32>
    %65 = arith.addf %59, %64 : vector<1x256xf32>
    %66 = arith.index_cast %arg0 : i32 to index
    %67 = arith.index_cast %arg1 : i32 to index
    %c11 = arith.constant 11 : index
    %68 = memref.load %arg3[%66, %67, %c11] : memref<2x2x12xf32, #tpu.memory_space<smem>>
    %69 = vector.broadcast %68 : f32 to vector<1x256xf32>
    %70 = arith.mulf %69, %6 : vector<1x256xf32>
    %71 = arith.addf %65, %70 : vector<1x256xf32>
    %72 = arith.mulf %71, %8 : vector<1x256xf32>
    %73 = arith.index_cast %arg0 : i32 to index
    %74 = arith.index_cast %arg1 : i32 to index
    %c2 = arith.constant 2 : index
    %75 = memref.load %arg3[%73, %74, %c2] : memref<2x2x12xf32, #tpu.memory_space<smem>>
    %76 = vector.broadcast %75 : f32 to vector<1x256xf32>
    %77 = arith.addf %72, %76 : vector<1x256xf32>
    %78 = math.absf %31 : vector<1x256xf32>
    %79 = math.absf %77 : vector<1x256xf32>
    %80 = arith.maximumf %79, %78 : vector<1x256xf32>
    %81 = arith.minimumf %79, %78 : vector<1x256xf32>
    %cst = arith.constant 1.000000e-30 : f32
    %82 = vector.broadcast %cst : f32 to vector<1x256xf32>
    %83 = arith.maximumf %80, %82 : vector<1x256xf32>
    %84 = arith.divf %81, %83 : vector<1x256xf32>
    %85 = arith.mulf %84, %84 : vector<1x256xf32>
    %cst_6 = arith.constant 1.000000e+00 : f32
    %86 = vector.broadcast %cst_6 : f32 to vector<1x256xf32>
    %87 = arith.addf %86, %85 : vector<1x256xf32>
    %88 = math.sqrt %87 : vector<1x256xf32>
    %cst_7 = arith.constant 1.000000e+00 : f32
    %89 = vector.broadcast %cst_7 : f32 to vector<1x256xf32>
    %90 = arith.addf %89, %88 : vector<1x256xf32>
    %91 = arith.divf %84, %90 : vector<1x256xf32>
    %92 = arith.mulf %91, %91 : vector<1x256xf32>
    %cst_8 = arith.constant 1.000000e+00 : f32
    %93 = vector.broadcast %cst_8 : f32 to vector<1x256xf32>
    %94 = arith.addf %93, %92 : vector<1x256xf32>
    %95 = math.sqrt %94 : vector<1x256xf32>
    %cst_9 = arith.constant 1.000000e+00 : f32
    %96 = vector.broadcast %cst_9 : f32 to vector<1x256xf32>
    %97 = arith.addf %96, %95 : vector<1x256xf32>
    %98 = arith.divf %91, %97 : vector<1x256xf32>
    %99 = arith.mulf %98, %98 : vector<1x256xf32>
    %cst_10 = arith.constant 0.111111112 : f32
    %100 = vector.broadcast %cst_10 : f32 to vector<1x256xf32>
    %101 = arith.mulf %99, %100 : vector<1x256xf32>
    %cst_11 = arith.constant -0.142857149 : f32
    %102 = vector.broadcast %cst_11 : f32 to vector<1x256xf32>
    %103 = arith.addf %102, %101 : vector<1x256xf32>
    %104 = arith.mulf %99, %103 : vector<1x256xf32>
    %cst_12 = arith.constant 2.000000e-01 : f32
    %105 = vector.broadcast %cst_12 : f32 to vector<1x256xf32>
    %106 = arith.addf %105, %104 : vector<1x256xf32>
    %107 = arith.mulf %99, %106 : vector<1x256xf32>
    %cst_13 = arith.constant -0.333333343 : f32
    %108 = vector.broadcast %cst_13 : f32 to vector<1x256xf32>
    %109 = arith.addf %108, %107 : vector<1x256xf32>
    %110 = arith.mulf %99, %109 : vector<1x256xf32>
    %cst_14 = arith.constant 1.000000e+00 : f32
    %111 = vector.broadcast %cst_14 : f32 to vector<1x256xf32>
    %112 = arith.addf %111, %110 : vector<1x256xf32>
    %113 = arith.mulf %98, %112 : vector<1x256xf32>
    %cst_15 = arith.constant 4.000000e+00 : f32
    %114 = vector.broadcast %cst_15 : f32 to vector<1x256xf32>
    %115 = arith.mulf %114, %113 : vector<1x256xf32>
    %116 = arith.cmpf ogt, %78, %79 : vector<1x256xf32>
    %cst_16 = arith.constant 1.57079637 : f32
    %117 = vector.broadcast %cst_16 : f32 to vector<1x256xf32>
    %118 = arith.subf %117, %115 : vector<1x256xf32>
    %119 = arith.select %116, %118, %115 : vector<1x256xi1>, vector<1x256xf32>
    %cst_17 = arith.constant 0.000000e+00 : f32
    %120 = vector.broadcast %cst_17 : f32 to vector<1x256xf32>
    %121 = arith.cmpf olt, %77, %120 : vector<1x256xf32>
    %cst_18 = arith.constant 3.14159274 : f32
    %122 = vector.broadcast %cst_18 : f32 to vector<1x256xf32>
    %123 = arith.subf %122, %119 : vector<1x256xf32>
    %124 = arith.select %121, %123, %119 : vector<1x256xi1>, vector<1x256xf32>
    %cst_19 = arith.constant 0.000000e+00 : f32
    %125 = vector.broadcast %cst_19 : f32 to vector<1x256xf32>
    %126 = arith.cmpf olt, %31, %125 : vector<1x256xf32>
    %cst_20 = arith.constant 0.000000e+00 : f32
    %127 = vector.broadcast %cst_20 : f32 to vector<1x256xf32>
    %128 = arith.subf %127, %124 : vector<1x256xf32>
    %129 = arith.select %126, %128, %124 : vector<1x256xi1>, vector<1x256xf32>
    %130 = arith.mulf %31, %31 : vector<1x256xf32>
    %131 = arith.mulf %77, %77 : vector<1x256xf32>
    %132 = arith.addf %130, %131 : vector<1x256xf32>
    %133 = math.sqrt %132 : vector<1x256xf32>
    %134 = math.absf %54 : vector<1x256xf32>
    %135 = math.absf %133 : vector<1x256xf32>
    %136 = arith.maximumf %135, %134 : vector<1x256xf32>
    %137 = arith.minimumf %135, %134 : vector<1x256xf32>
    %cst_21 = arith.constant 1.000000e-30 : f32
    %138 = vector.broadcast %cst_21 : f32 to vector<1x256xf32>
    %139 = arith.maximumf %136, %138 : vector<1x256xf32>
    %140 = arith.divf %137, %139 : vector<1x256xf32>
    %141 = arith.mulf %140, %140 : vector<1x256xf32>
    %cst_22 = arith.constant 1.000000e+00 : f32
    %142 = vector.broadcast %cst_22 : f32 to vector<1x256xf32>
    %143 = arith.addf %142, %141 : vector<1x256xf32>
    %144 = math.sqrt %143 : vector<1x256xf32>
    %cst_23 = arith.constant 1.000000e+00 : f32
    %145 = vector.broadcast %cst_23 : f32 to vector<1x256xf32>
    %146 = arith.addf %145, %144 : vector<1x256xf32>
    %147 = arith.divf %140, %146 : vector<1x256xf32>
    %148 = arith.mulf %147, %147 : vector<1x256xf32>
    %cst_24 = arith.constant 1.000000e+00 : f32
    %149 = vector.broadcast %cst_24 : f32 to vector<1x256xf32>
    %150 = arith.addf %149, %148 : vector<1x256xf32>
    %151 = math.sqrt %150 : vector<1x256xf32>
    %cst_25 = arith.constant 1.000000e+00 : f32
    %152 = vector.broadcast %cst_25 : f32 to vector<1x256xf32>
    %153 = arith.addf %152, %151 : vector<1x256xf32>
    %154 = arith.divf %147, %153 : vector<1x256xf32>
    %155 = arith.mulf %154, %154 : vector<1x256xf32>
    %cst_26 = arith.constant 0.111111112 : f32
    %156 = vector.broadcast %cst_26 : f32 to vector<1x256xf32>
    %157 = arith.mulf %155, %156 : vector<1x256xf32>
    %cst_27 = arith.constant -0.142857149 : f32
    %158 = vector.broadcast %cst_27 : f32 to vector<1x256xf32>
    %159 = arith.addf %158, %157 : vector<1x256xf32>
    %160 = arith.mulf %155, %159 : vector<1x256xf32>
    %cst_28 = arith.constant 2.000000e-01 : f32
    %161 = vector.broadcast %cst_28 : f32 to vector<1x256xf32>
    %162 = arith.addf %161, %160 : vector<1x256xf32>
    %163 = arith.mulf %155, %162 : vector<1x256xf32>
    %cst_29 = arith.constant -0.333333343 : f32
    %164 = vector.broadcast %cst_29 : f32 to vector<1x256xf32>
    %165 = arith.addf %164, %163 : vector<1x256xf32>
    %166 = arith.mulf %155, %165 : vector<1x256xf32>
    %cst_30 = arith.constant 1.000000e+00 : f32
    %167 = vector.broadcast %cst_30 : f32 to vector<1x256xf32>
    %168 = arith.addf %167, %166 : vector<1x256xf32>
    %169 = arith.mulf %154, %168 : vector<1x256xf32>
    %cst_31 = arith.constant 4.000000e+00 : f32
    %170 = vector.broadcast %cst_31 : f32 to vector<1x256xf32>
    %171 = arith.mulf %170, %169 : vector<1x256xf32>
    %172 = arith.cmpf ogt, %134, %135 : vector<1x256xf32>
    %cst_32 = arith.constant 1.57079637 : f32
    %173 = vector.broadcast %cst_32 : f32 to vector<1x256xf32>
    %174 = arith.subf %173, %171 : vector<1x256xf32>
    %175 = arith.select %172, %174, %171 : vector<1x256xi1>, vector<1x256xf32>
    %cst_33 = arith.constant 0.000000e+00 : f32
    %176 = vector.broadcast %cst_33 : f32 to vector<1x256xf32>
    %177 = arith.cmpf olt, %133, %176 : vector<1x256xf32>
    %cst_34 = arith.constant 3.14159274 : f32
    %178 = vector.broadcast %cst_34 : f32 to vector<1x256xf32>
    %179 = arith.subf %178, %175 : vector<1x256xf32>
    %180 = arith.select %177, %179, %175 : vector<1x256xi1>, vector<1x256xf32>
    %cst_35 = arith.constant 0.000000e+00 : f32
    %181 = vector.broadcast %cst_35 : f32 to vector<1x256xf32>
    %182 = arith.cmpf olt, %54, %181 : vector<1x256xf32>
    %cst_36 = arith.constant 0.000000e+00 : f32
    %183 = vector.broadcast %cst_36 : f32 to vector<1x256xf32>
    %184 = arith.subf %183, %180 : vector<1x256xf32>
    %185 = arith.select %182, %184, %180 : vector<1x256xi1>, vector<1x256xf32>
    %cst_37 = arith.constant 0.318309873 : f32
    %186 = vector.broadcast %cst_37 : f32 to vector<1x256xf32>
    %187 = arith.mulf %129, %186 : vector<1x256xf32>
    %cst_38 = arith.constant 1.000000e+00 : f32
    %188 = vector.broadcast %cst_38 : f32 to vector<1x256xf32>
    %189 = arith.addf %187, %188 : vector<1x256xf32>
    %cst_39 = arith.constant 1.550000e+01 : f32
    %190 = vector.broadcast %cst_39 : f32 to vector<1x256xf32>
    %191 = arith.mulf %189, %190 : vector<1x256xf32>
    %cst_40 = arith.constant 0.636619746 : f32
    %192 = vector.broadcast %cst_40 : f32 to vector<1x256xf32>
    %193 = arith.mulf %185, %192 : vector<1x256xf32>
    %cst_41 = arith.constant 1.000000e+00 : f32
    %194 = vector.broadcast %cst_41 : f32 to vector<1x256xf32>
    %195 = arith.addf %193, %194 : vector<1x256xf32>
    %cst_42 = arith.constant 7.500000e+00 : f32
    %196 = vector.broadcast %cst_42 : f32 to vector<1x256xf32>
    %197 = arith.mulf %195, %196 : vector<1x256xf32>
    %198 = math.floor %191 : vector<1x256xf32>
    %199 = math.floor %197 : vector<1x256xf32>
    %200 = arith.subf %191, %198 : vector<1x256xf32>
    %201 = arith.subf %197, %199 : vector<1x256xf32>
    %202 = arith.fptosi %198 : vector<1x256xf32> to vector<1x256xi32>
    %203 = arith.fptosi %199 : vector<1x256xf32> to vector<1x256xi32>
    %c0_i32_43 = arith.constant 0 : i32
    %204 = vector.broadcast %c0_i32_43 : i32 to vector<1x256xi32>
    %205 = arith.cmpi sge, %202, %204 : vector<1x256xi32>
    %c31_i32 = arith.constant 31 : i32
    %206 = vector.broadcast %c31_i32 : i32 to vector<1x256xi32>
    %207 = arith.cmpi sle, %202, %206 : vector<1x256xi32>
    %208 = arith.andi %205, %207 : vector<1x256xi1>
    %209 = arith.extui %208 : vector<1x256xi1> to vector<1x256xi32>
    %210 = arith.sitofp %209 : vector<1x256xi32> to vector<1x256xf32>
    %c-1_i32 = arith.constant -1 : i32
    %211 = vector.broadcast %c-1_i32 : i32 to vector<1x256xi32>
    %212 = arith.cmpi sge, %202, %211 : vector<1x256xi32>
    %c30_i32 = arith.constant 30 : i32
    %213 = vector.broadcast %c30_i32 : i32 to vector<1x256xi32>
    %214 = arith.cmpi sle, %202, %213 : vector<1x256xi32>
    %215 = arith.andi %212, %214 : vector<1x256xi1>
    %216 = arith.extui %215 : vector<1x256xi1> to vector<1x256xi32>
    %217 = arith.sitofp %216 : vector<1x256xi32> to vector<1x256xf32>
    %c0_i32_44 = arith.constant 0 : i32
    %218 = vector.broadcast %c0_i32_44 : i32 to vector<1x256xi32>
    %219 = arith.cmpi sge, %203, %218 : vector<1x256xi32>
    %c15_i32 = arith.constant 15 : i32
    %220 = vector.broadcast %c15_i32 : i32 to vector<1x256xi32>
    %221 = arith.cmpi sle, %203, %220 : vector<1x256xi32>
    %222 = arith.andi %219, %221 : vector<1x256xi1>
    %223 = arith.extui %222 : vector<1x256xi1> to vector<1x256xi32>
    %224 = arith.sitofp %223 : vector<1x256xi32> to vector<1x256xf32>
    %c-1_i32_45 = arith.constant -1 : i32
    %225 = vector.broadcast %c-1_i32_45 : i32 to vector<1x256xi32>
    %226 = arith.cmpi sge, %203, %225 : vector<1x256xi32>
    %c14_i32 = arith.constant 14 : i32
    %227 = vector.broadcast %c14_i32 : i32 to vector<1x256xi32>
    %228 = arith.cmpi sle, %203, %227 : vector<1x256xi32>
    %229 = arith.andi %226, %228 : vector<1x256xi1>
    %230 = arith.extui %229 : vector<1x256xi1> to vector<1x256xi32>
    %231 = arith.sitofp %230 : vector<1x256xi32> to vector<1x256xf32>
    %cst_46 = arith.constant 1.000000e+00 : f32
    %232 = vector.broadcast %cst_46 : f32 to vector<1x256xf32>
    %233 = arith.subf %232, %200 : vector<1x256xf32>
    %cst_47 = arith.constant 1.000000e+00 : f32
    %234 = vector.broadcast %cst_47 : f32 to vector<1x256xf32>
    %235 = arith.subf %234, %201 : vector<1x256xf32>
    %236 = arith.mulf %233, %235 : vector<1x256xf32>
    %237 = arith.mulf %236, %210 : vector<1x256xf32>
    %238 = arith.mulf %237, %224 : vector<1x256xf32>
    %cst_48 = arith.constant 1.000000e+00 : f32
    %239 = vector.broadcast %cst_48 : f32 to vector<1x256xf32>
    %240 = arith.subf %239, %201 : vector<1x256xf32>
    %241 = arith.mulf %200, %240 : vector<1x256xf32>
    %242 = arith.mulf %241, %217 : vector<1x256xf32>
    %243 = arith.mulf %242, %224 : vector<1x256xf32>
    %cst_49 = arith.constant 1.000000e+00 : f32
    %244 = vector.broadcast %cst_49 : f32 to vector<1x256xf32>
    %245 = arith.subf %244, %200 : vector<1x256xf32>
    %246 = arith.mulf %245, %201 : vector<1x256xf32>
    %247 = arith.mulf %246, %210 : vector<1x256xf32>
    %248 = arith.mulf %247, %231 : vector<1x256xf32>
    %249 = arith.mulf %200, %201 : vector<1x256xf32>
    %250 = arith.mulf %249, %217 : vector<1x256xf32>
    %251 = arith.mulf %250, %231 : vector<1x256xf32>
    %c32_i32 = arith.constant 32 : i32
    %252 = vector.broadcast %c32_i32 : i32 to vector<1x256xi32>
    %253 = arith.muli %203, %252 : vector<1x256xi32>
    %254 = arith.addi %253, %202 : vector<1x256xi32>
    %cst_50 = arith.constant 0.000000e+00 : f32
    %255 = vector.broadcast %cst_50 : f32 to vector<3x256xf32>
    %256 = tpu.iota {dimensions = array<i32: 0>} : vector<512x1xi32>
    %c0_i32_51 = arith.constant 0 : i32
    %257 = vector.broadcast %c0_i32_51 : i32 to vector<512x1xi32>
    %258 = arith.addi %256, %257 : vector<512x1xi32>
    %259 = vector.broadcast %258 : vector<512x1xi32> to vector<512x256xi32>
    %260 = vector.broadcast %254 : vector<1x256xi32> to vector<512x256xi32>
    %261 = arith.cmpi eq, %259, %260 : vector<512x256xi32>
    %c1_i32 = arith.constant 1 : i32
    %262 = vector.broadcast %c1_i32 : i32 to vector<1x256xi32>
    %263 = arith.addi %254, %262 : vector<1x256xi32>
    %264 = vector.broadcast %258 : vector<512x1xi32> to vector<512x256xi32>
    %265 = vector.broadcast %263 : vector<1x256xi32> to vector<512x256xi32>
    %266 = arith.cmpi eq, %264, %265 : vector<512x256xi32>
    %c32_i32_52 = arith.constant 32 : i32
    %267 = vector.broadcast %c32_i32_52 : i32 to vector<1x256xi32>
    %268 = arith.addi %254, %267 : vector<1x256xi32>
    %269 = vector.broadcast %258 : vector<512x1xi32> to vector<512x256xi32>
    %270 = vector.broadcast %268 : vector<1x256xi32> to vector<512x256xi32>
    %271 = arith.cmpi eq, %269, %270 : vector<512x256xi32>
    %c33_i32 = arith.constant 33 : i32
    %272 = vector.broadcast %c33_i32 : i32 to vector<1x256xi32>
    %273 = arith.addi %254, %272 : vector<1x256xi32>
    %274 = vector.broadcast %258 : vector<512x1xi32> to vector<512x256xi32>
    %275 = vector.broadcast %273 : vector<1x256xi32> to vector<512x256xi32>
    %276 = arith.cmpi eq, %274, %275 : vector<512x256xi32>
    %cst_53 = arith.constant 0.000000e+00 : f32
    %277 = vector.shape_cast %251 : vector<1x256xf32> to vector<1x256xf32>
    %278 = vector.broadcast %277 : vector<1x256xf32> to vector<512x256xf32>
    %279 = vector.broadcast %cst_53 : f32 to vector<512x256xf32>
    %280 = arith.select %276, %278, %279 : vector<512x256xi1>, vector<512x256xf32>
    %281 = vector.shape_cast %248 : vector<1x256xf32> to vector<1x256xf32>
    %282 = vector.broadcast %281 : vector<1x256xf32> to vector<512x256xf32>
    %283 = arith.select %271, %282, %280 : vector<512x256xi1>, vector<512x256xf32>
    %284 = vector.shape_cast %243 : vector<1x256xf32> to vector<1x256xf32>
    %285 = vector.broadcast %284 : vector<1x256xf32> to vector<512x256xf32>
    %286 = arith.select %266, %285, %283 : vector<512x256xi1>, vector<512x256xf32>
    %287 = vector.shape_cast %238 : vector<1x256xf32> to vector<1x256xf32>
    %288 = vector.broadcast %287 : vector<1x256xf32> to vector<512x256xf32>
    %289 = arith.select %261, %288, %286 : vector<512x256xi1>, vector<512x256xf32>
    %290 = arith.truncf %289 : vector<512x256xf32> to vector<512x256xbf16>
    %c0_54 = arith.constant 0 : index
    %c0_55 = arith.constant 0 : index
    %c0_56 = arith.constant 0 : index
    %c0_57 = arith.constant 0 : index
    %291 = vector.load %arg7[%c0_54, %c0_55, %c0_56, %c0_57] : memref<1x1x3x512xbf16, #tpu.memory_space<vmem>>, vector<1x1x3x512xbf16>
    %292 = vector.shape_cast %291 : vector<1x1x3x512xbf16> to vector<3x512xbf16>
    %cst_58 = arith.constant dense<0.000000e+00> : vector<3x256xf32>
    %293 = tpu.matmul %292, %290, %cst_58 {dimension_numbers = #tpu.dot_dimension_numbers<[1], [0], [0], [1], [0, 0, 1, 1], [], []>} : vector<3x512xbf16>, vector<512x256xbf16>, vector<3x256xf32> -> vector<3x256xf32>
    %294 = arith.addf %255, %293 : vector<3x256xf32>
    %c0_59 = arith.constant 0 : index
    %c0_60 = arith.constant 0 : index
    %c0_61 = arith.constant 0 : index
    %295 = vector.load %arg4[%c0_59, %c0_60, %c0_61] : memref<1x3x256xf32, #tpu.memory_space<vmem>>, vector<1x3x256xf32>
    %296 = vector.shape_cast %295 : vector<1x3x256xf32> to vector<3x256xf32>
    %297 = arith.subf %296, %294 : vector<3x256xf32>
    %298 = math.absf %297 : vector<3x256xf32>
    %c0_62 = arith.constant 0 : index
    %c0_63 = arith.constant 0 : index
    %c0_64 = arith.constant 0 : index
    %c0_65 = arith.constant 0 : index
    %299 = vector.load %arg6[%c0_62, %c0_63, %c0_64, %c0_65] : memref<1x1x1x256xf32, #tpu.memory_space<vmem>>, vector<1x1x1x256xf32>
    %300 = vector.shape_cast %299 : vector<1x1x1x256xf32> to vector<1x256xf32>
    %301 = vector.broadcast %300 : vector<1x256xf32> to vector<3x256xf32>
    %302 = arith.mulf %298, %301 : vector<3x256xf32>
    %c0_66 = arith.constant 0 : index
    %c0_67 = arith.constant 0 : index
    %c0_68 = arith.constant 0 : index
    %c0_69 = arith.constant 0 : index
    %303 = vector.load %arg9[%c0_66, %c0_67, %c0_68, %c0_69] : memref<1x1x8x128xf32, #tpu.memory_space<vmem>>, vector<1x1x8x128xf32>
    %304 = vector.shape_cast %302 : vector<3x256xf32> to vector<1x3x256xf32>
    %cst_70 = arith.constant dense<0.000000e+00> : vector<1xf32>
    %305 = vector.multi_reduction <add>, %304, %cst_70 [1, 2] : vector<1x3x256xf32> to vector<1xf32>
    %306 = vector.shape_cast %305 : vector<1xf32> to vector<1x1x1xf32>
    %307 = vector.extract %306[0, 0, 0] : f32 from vector<1x1x1xf32>
    %cst_71 = arith.constant 3.25520843E-4 : f32
    %308 = arith.mulf %307, %cst_71 : f32
    %309 = vector.broadcast %308 : f32 to vector<1x1x8x128xf32>
    %310 = arith.addf %303, %309 : vector<1x1x8x128xf32>
    %c0_72 = arith.constant 0 : index
    %c0_73 = arith.constant 0 : index
    %c0_74 = arith.constant 0 : index
    %c0_75 = arith.constant 0 : index
    %311 = vector.load %arg9[%c0_72, %c0_73, %c0_74, %c0_75] : memref<1x1x8x128xf32, #tpu.memory_space<vmem>>, vector<1x1x8x128xf32>
    tpu.vector_store %arg9[%c0_72, %c0_73, %c0_74, %c0_75], %310 {strides = array<i32>} : memref<1x1x8x128xf32, #tpu.memory_space<vmem>>, vector<1x1x8x128xf32>,
    return
  }
  func.func @transform_0(%arg0: i32, %arg1: i32, %arg2: i32, %arg3: memref<2x2x12xf32, #tpu.memory_space<smem>>) -> (i32, i32, i32) {
    %c0_i32 = arith.constant 0 : i32
    %c0_i32_0 = arith.constant 0 : i32
    return %arg0, %c0_i32, %arg2 : i32, i32, i32
  }
  func.func @transform_1(%arg0: i32, %arg1: i32, %arg2: i32, %arg3: memref<2x2x12xf32, #tpu.memory_space<smem>>) -> (i32, i32, i32) {
    %c0_i32 = arith.constant 0 : i32
    %c0_i32_0 = arith.constant 0 : i32
    return %arg0, %c0_i32, %arg2 : i32, i32, i32
  }
  func.func @transform_2(%arg0: i32, %arg1: i32, %arg2: i32, %arg3: memref<2x2x12xf32, #tpu.memory_space<smem>>) -> (i32, i32, i32, i32) {
    %c0_i32 = arith.constant 0 : i32
    %c0_i32_0 = arith.constant 0 : i32
    return %arg0, %arg1, %c0_i32, %arg2 : i32, i32, i32, i32
  }
  func.func @transform_3(%arg0: i32, %arg1: i32, %arg2: i32, %arg3: memref<2x2x12xf32, #tpu.memory_space<smem>>) -> (i32, i32, i32, i32) {
    %c0_i32 = arith.constant 0 : i32
    %c0_i32_0 = arith.constant 0 : i32
    %c0_i32_1 = arith.constant 0 : i32
    return %arg0, %arg1, %c0_i32, %c0_i32_0 : i32, i32, i32, i32
  }
  func.func @transform_4(%arg0: i32, %arg1: i32, %arg2: i32, %arg3: memref<2x2x12xf32, #tpu.memory_space<smem>>) -> (i32, i32) {
    %c0_i32 = arith.constant 0 : i32
    %c0_i32_0 = arith.constant 0 : i32
    return %c0_i32, %arg2 : i32, i32
  }
  func.func @transform_5(%arg0: i32, %arg1: i32, %arg2: i32, %arg3: memref<2x2x12xf32, #tpu.memory_space<smem>>) -> (i32, i32, i32, i32) {
    %c0_i32 = arith.constant 0 : i32
    %c0_i32_0 = arith.constant 0 : i32
    %c0_i32_1 = arith.constant 0 : i32
    return %arg0, %arg1, %c0_i32, %c0_i32_0 : i32, i32, i32, i32
  }
}

</mosaic_0001>

<llo_original>
// kernel: tpu_custom_call.1
$region0: #{tpu_custom_call.1}
  #allocation0 [shape = 'u32[]', space=smem, size = 0x4, offset = 0x4, fixed_abs, tag = 'smem constant byte address 0x4 - core index']
  #allocation1 [shape = 'u32[144,128]{1,0:T(1,128)}', space=vmem, size = 0x12000, scoped, tag = 'internal scratch']
  #allocation2 [shape = 's32[1]{0}', space=sflag, size = 0x4, scoped, tag = 'scoped memory for tpu_custom_call.1']
  #allocation3 [shape = 'u8[2048]{0}', space=smem, size = 0x800, scoped, tag = 'prefetched SMEM operand 0']
  %s0 = inlined_call_operand.vmem [shape: f32[2,2,12], index: 0, kind: input, shape index: {}]
  %s1 = inlined_call_operand.vmem [shape: f32[2,3,512], index: 1, kind: input, shape index: {}]
  %s2 = inlined_call_operand.vmem [shape: f32[2,1,512], index: 2, kind: input, shape index: {}]
  %s3 = inlined_call_operand.vmem [shape: f32[2,2,1,512], index: 3, kind: input, shape index: {}]
  %s4 = inlined_call_operand.vmem [shape: bf16[2,2,3,512], index: 4, kind: input, shape index: {}]
  %s5 = inlined_call_operand.vmem [shape: f32[3,512], index: 5, kind: input, shape index: {}]
  %s6 = inlined_call_operand.hbm [shape: f32[2,2,8,128], index: 6, kind: output, shape index: {}]
  %s7 = sld [smem:[#allocation0]]
  $region57: #{tpu_custom_call.1} parent=0
    _
  %s9 = ssub.s32 1, %s7
  %s10 = scalar_select 0, %s9, %s7
  %s11 = sshll.u32 %s0, 4
  %s12 = int_to_ptr.vmem [resolvable:$true] %s11
  %14 = dma.vmem_to_smem %s12, 64, [#allocation3], [#allocation2]
  %15 = dma.done [#allocation2], 64
  %16 = sfence
  $region1: #{tpu_custom_call.1} parent=0
    #allocation4 [shape = 'u8[8192]{0}', space=vmem, size = 0x2000, scoped, tag = 'output window, operand 0']
    #allocation5 [shape = 's32[2]{0}', space=sflag, size = 0x8, scoped, tag = 'scoped memory for tpu_custom_call.1']
    %17 = vsyncpa [#allocation5], 0
    %s18 = scalar_lea.sflag [#allocation5], 1
    %19 = vsyncpa %s18, 0
    loop: start=0, step=1, limit=10
    $region2: #{tpu_custom_call.1} parent=1 // loop_pre_header
      _
    $region3: #{tpu_custom_call.1} parent=1 // loop_header
      %s21 = sphi 0, %s25
      %p22 = scmp.ge.s32.totalorder %s21, 10
      %s28 = sphi 0, %s47
      %s29 = sphi 0, %s43
      %s30 = sphi 0, %s39
      %s31 = sphi 0, %s28
      %s32 = sphi 0, %s29
      %s33 = sphi 0, %s30
      %s34 = sphi 0, %s31
      %s35 = sphi 0, %s32
      %s36 = sphi 0, %s33
      %s52 = sphi 0, %s54
      %s55 = sphi 0, %s52
      %s56 = sphi 0, %s55
      %s72 = sphi 0, %s56
      %s80 = sphi 0, %s82
      %s83 = sphi 0, %s80
      %s84 = sphi 0, %s83
      %s100 = sphi 0, %s84
      %s110 = sphi 0, %s112
      %s113 = sphi 0, %s110
      %s114 = sphi 0, %s113
      %s130 = sphi 0, %s114
      %s138 = sphi 0, %s140
      %s141 = sphi 0, %s138
      %s142 = sphi 0, %s141
      %s158 = sphi 0, %s142
      %s164 = sphi 0, %s166
      %s167 = sphi 0, %s164
      %s168 = sphi 0, %s167
      %s184 = sphi 0, %s168
      %s192 = sphi 0, %s194
      %s195 = sphi 0, %s192
      %s196 = sphi 0, %s195
      %s212 = sphi 0, %s196
    $region4: #{tpu_custom_call.1} parent=1 // loop_header_branch
      %24 = sbr.rel (%p22) target = $region8
    $region5: #{tpu_custom_call.1} parent=1 // loop_body
      %s26 = ssub.s32 %s21, 1
      %s27 = ssub.s32 %s21, 2
      %s37 = sadd.s32 1, %s30
      %p38 = scmp.ge.s32.totalorder %s37, 2
      %s39 = scalar_select %p38, 0, %s37
      %s40 = sadd.s32 1, %s29
      %s41 = scalar_select %p38, %s40, %s29
      %p42 = scmp.ge.s32.totalorder %s41, 2
      %s43 = scalar_select %p42, 0, %s41
      %s44 = sadd.s32 1, %s28
      %s45 = scalar_select %p42, %s44, %s28
      %p46 = scmp.ge.s32.totalorder %s45, 2
      %s47 = scalar_select %p46, 0, %s45
      %s48 = ssub.s32 %s28, %s47
      %s49 = ssub.s32 %s30, %s39
      %s50 = sor.u32 %s48, %s49
      %p51 = scmp.eq.s32.totalorder %s50, 0
      %s53 = sadd.s32 %s52, 1
      %s54 = scalar_select %p51, %s52, %s53
      %p57 = pneg %p51
      %p58 = scmp.eq.s32.totalorder %s21, 7
      %p59 = por %p57, %p58
      %p60 = scmp.ne.s32.totalorder %s52, %s55
      %p61 = scmp.eq.s32.totalorder %s21, 0
      %p62 = por %p60, %p61
      %p63 = scmp.ne.s32.totalorder %s52, %s55
      %p64 = scmp.eq.s32.totalorder %s26, 7
      %p65 = por %p63, %p64
      %p66 = scmp.ne.s32.totalorder %s55, %s56
      %p67 = scmp.eq.s32.totalorder %s26, 0
      %p68 = por %p66, %p67
      %p69 = scmp.ne.s32.totalorder %s55, %s56
      %p70 = scmp.eq.s32.totalorder %s27, 7
      %p71 = por %p69, %p70
      %p73 = scmp.ne.s32.totalorder %s56, %s72
      %p74 = scmp.eq.s32.totalorder %s27, 0
      %p75 = por %p73, %p74
      %s76 = ssub.s32 %s28, %s47
      %s77 = ssub.s32 %s30, %s39
      %s78 = sor.u32 %s76, %s77
      %p79 = scmp.eq.s32.totalorder %s78, 0
      %s81 = sadd.s32 %s80, 1
      %s82 = scalar_select %p79, %s80, %s81
      %p85 = pneg %p79
      %p86 = scmp.eq.s32.totalorder %s21, 7
      %p87 = por %p85, %p86
      %p88 = scmp.ne.s32.totalorder %s80, %s83
      %p89 = scmp.eq.s32.totalorder %s21, 0
      %p90 = por %p88, %p89
      %p91 = scmp.ne.s32.totalorder %s80, %s83
      %p92 = scmp.eq.s32.totalorder %s26, 7
      %p93 = por %p91, %p92
      %p94 = scmp.ne.s32.totalorder %s83, %s84
      %p95 = scmp.eq.s32.totalorder %s26, 0
      %p96 = por %p94, %p95
      %p97 = scmp.ne.s32.totalorder %s83, %s84
      %p98 = scmp.eq.s32.totalorder %s27, 7
      %p99 = por %p97, %p98
      %p101 = scmp.ne.s32.totalorder %s84, %s100
      %p102 = scmp.eq.s32.totalorder %s27, 0
      %p103 = por %p101, %p102
      %s104 = ssub.s32 %s28, %s47
      %s105 = ssub.s32 %s29, %s43
      %s106 = sor.u32 %s104, %s105
      %s107 = ssub.s32 %s30, %s39
      %s108 = sor.u32 %s106, %s107
      %p109 = scmp.eq.s32.totalorder %s108, 0
      %s111 = sadd.s32 %s110, 1
      %s112 = scalar_select %p109, %s110, %s111
      %p115 = pneg %p109
      %p116 = scmp.eq.s32.totalorder %s21, 7
      %p117 = por %p115, %p116
      %p118 = scmp.ne.s32.totalorder %s110, %s113
      %p119 = scmp.eq.s32.totalorder %s21, 0
      %p120 = por %p118, %p119
      %p121 = scmp.ne.s32.totalorder %s110, %s113
      %p122 = scmp.eq.s32.totalorder %s26, 7
      %p123 = por %p121, %p122
      %p124 = scmp.ne.s32.totalorder %s113, %s114
      %p125 = scmp.eq.s32.totalorder %s26, 0
      %p126 = por %p124, %p125
      %p127 = scmp.ne.s32.totalorder %s113, %s114
      %p128 = scmp.eq.s32.totalorder %s27, 7
      %p129 = por %p127, %p128
      %p131 = scmp.ne.s32.totalorder %s114, %s130
      %p132 = scmp.eq.s32.totalorder %s27, 0
      %p133 = por %p131, %p132
      %s134 = ssub.s32 %s28, %s47
      %s135 = ssub.s32 %s29, %s43
      %s136 = sor.u32 %s134, %s135
      %p137 = scmp.eq.s32.totalorder %s136, 0
      %s139 = sadd.s32 %s138, 1
      %s140 = scalar_select %p137, %s138, %s139
      %p143 = pneg %p137
      %p144 = scmp.eq.s32.totalorder %s21, 7
      %p145 = por %p143, %p144
      %p146 = scmp.ne.s32.totalorder %s138, %s141
      %p147 = scmp.eq.s32.totalorder %s21, 0
      %p148 = por %p146, %p147
      %p149 = scmp.ne.s32.totalorder %s138, %s141
      %p150 = scmp.eq.s32.totalorder %s26, 7
      %p151 = por %p149, %p150
      %p152 = scmp.ne.s32.totalorder %s141, %s142
      %p153 = scmp.eq.s32.totalorder %s26, 0
      %p154 = por %p152, %p153
      %p155 = scmp.ne.s32.totalorder %s141, %s142
      %p156 = scmp.eq.s32.totalorder %s27, 7
      %p157 = por %p155, %p156
      %p159 = scmp.ne.s32.totalorder %s142, %s158
      %p160 = scmp.eq.s32.totalorder %s27, 0
      %p161 = por %p159, %p160
      %s162 = ssub.s32 %s30, %s39
      %p163 = scmp.eq.s32.totalorder %s162, 0
      %s165 = sadd.s32 %s164, 1
      %s166 = scalar_select %p163, %s164, %s165
      %p169 = pneg %p163
      %p170 = scmp.eq.s32.totalorder %s21, 7
      %p171 = por %p169, %p170
      %p172 = scmp.ne.s32.totalorder %s164, %s167
      %p173 = scmp.eq.s32.totalorder %s21, 0
      %p174 = por %p172, %p173
      %p175 = scmp.ne.s32.totalorder %s164, %s167
      %p176 = scmp.eq.s32.totalorder %s26, 7
      %p177 = por %p175, %p176
      %p178 = scmp.ne.s32.totalorder %s167, %s168
      %p179 = scmp.eq.s32.totalorder %s26, 0
      %p180 = por %p178, %p179
      %p181 = scmp.ne.s32.totalorder %s167, %s168
      %p182 = scmp.eq.s32.totalorder %s27, 7
      %p183 = por %p181, %p182
      %p185 = scmp.ne.s32.totalorder %s168, %s184
      %p186 = scmp.eq.s32.totalorder %s27, 0
      %p187 = por %p185, %p186
      %s188 = ssub.s32 %s28, %s47
      %s189 = ssub.s32 %s29, %s43
      %s190 = sor.u32 %s188, %s189
      %p191 = scmp.eq.s32.totalorder %s190, 0
      %s193 = sadd.s32 %s192, 1
      %s194 = scalar_select %p191, %s192, %s193
      %p197 = pneg %p191
      %p198 = scmp.eq.s32.totalorder %s21, 7
      %p199 = por %p197, %p198
      %p200 = scmp.ne.s32.totalorder %s192, %s195
      %p201 = scmp.eq.s32.totalorder %s21, 0
      %p202 = por %p200, %p201
      %p203 = scmp.ne.s32.totalorder %s192, %s195
      %p204 = scmp.eq.s32.totalorder %s26, 7
      %p205 = por %p203, %p204
      %p206 = scmp.ne.s32.totalorder %s195, %s196
      %p207 = scmp.eq.s32.totalorder %s26, 0
      %p208 = por %p206, %p207
      %p209 = scmp.ne.s32.totalorder %s195, %s196
      %p210 = scmp.eq.s32.totalorder %s27, 7
      %p211 = por %p209, %p210
      %p213 = scmp.ne.s32.totalorder %s196, %s212
      %p214 = scmp.eq.s32.totalorder %s27, 0
      %p215 = por %p213, %p214
      %p216 = scmp.le.s32.totalorder 1, %s21
      %p217 = scmp.lt.s32.totalorder %s21, 9
      %p218 = pnand %p216, %p217
      %p219 = pneg %p218
      // Predicated region
      $region9: #{tpu_custom_call.1} parent=5 // pred_check
        _
      $region10: #{tpu_custom_call.1} parent=5 // pred_check_branch
        %221 = sbr.rel (%p218) target = $region12
      $region11: #{tpu_custom_call.1} parent=5 // pred_region
        %s222 = ssub.s32 %s21, 1
      $region12: #{tpu_custom_call.1} parent=5 // pred_fallthru
        _
      %p223 = scmp.lt.s32.totalorder %s21, 8
      // Predicated region
      $region13: #{tpu_custom_call.1} parent=5 // pred_check
        %p224 = pneg %p223
      $region14: #{tpu_custom_call.1} parent=5 // pred_check_branch
        %226 = sbr.rel (%p224) target = $region16
      $region15: #{tpu_custom_call.1} parent=5 // pred_region
        // Predicated region
        $region17: #{tpu_custom_call.1} parent=15 // pred_check
          %p227 = pneg %p62
        $region18: #{tpu_custom_call.1} parent=15 // pred_check_branch
          %229 = sbr.rel (%p227) target = $region20
        $region19: #{tpu_custom_call.1} parent=15 // pred_region
          %s230 = smul.u32 2, %s30
          %p231 = scmp.lt.s32.totalorder %s28, 1
          %s232 = scalar_select %p231, %s28, 1
          %p233 = scmp.lt.s32.totalorder %s230, 3
          %s234 = scalar_select %p233, %s230, 3
          %s235 = smul.addr %s232, 4
          %s236 = sadd.s32 %s234, %s235
          %s237 = smul.addr %s236, 4
          %s238 = scalar_lea.vmem %s1, %s237
          %s239 = smul.u32 2, %s30
        $region20: #{tpu_custom_call.1} parent=15 // pred_fallthru
          _
        // Predicated region
        $region21: #{tpu_custom_call.1} parent=15 // pred_check
          %p240 = pneg %p90
        $region22: #{tpu_custom_call.1} parent=15 // pred_check_branch
          %242 = sbr.rel (%p240) target = $region24
        $region23: #{tpu_custom_call.1} parent=15 // pred_region
          %s243 = smul.u32 2, %s30
          %p244 = scmp.lt.s32.totalorder %s28, 1
          %s245 = scalar_select %p244, %s28, 1
          %p246 = scmp.lt.s32.totalorder %s243, 3
          %s247 = scalar_select %p246, %s243, 3
          %s248 = smul.addr %s245, 4
          %s249 = sadd.s32 %s247, %s248
          %s250 = scalar_lea.vmem %s2, %s249
          %s251 = smul.u32 2, %s30
        $region24: #{tpu_custom_call.1} parent=15 // pred_fallthru
          _
        // Predicated region
        $region25: #{tpu_custom_call.1} parent=15 // pred_check
          %p252 = pneg %p120
        $region26: #{tpu_custom_call.1} parent=15 // pred_check_branch
          %254 = sbr.rel (%p252) target = $region28
        $region27: #{tpu_custom_call.1} parent=15 // pred_region
          %s255 = smul.u32 2, %s30
          %p256 = scmp.lt.s32.totalorder %s28, 1
          %s257 = scalar_select %p256, %s28, 1
          %p258 = scmp.lt.s32.totalorder %s29, 1
          %s259 = scalar_select %p258, %s29, 1
          %p260 = scmp.lt.s32.totalorder %s255, 3
          %s261 = scalar_select %p260, %s255, 3
          %s262 = smul.addr %s259, 4
          %s263 = sadd.s32 %s261, %s262
          %s264 = smul.addr %s257, 8
          %s265 = sadd.s32 %s263, %s264
          %s266 = scalar_lea.vmem %s3, %s265
          %s267 = smul.u32 2, %s30
        $region28: #{tpu_custom_call.1} parent=15 // pred_fallthru
          _
        // Predicated region
        $region29: #{tpu_custom_call.1} parent=15 // pred_check
          %p268 = pneg %p148
        $region30: #{tpu_custom_call.1} parent=15 // pred_check_branch
          %270 = sbr.rel (%p268) target = $region32
        $region31: #{tpu_custom_call.1} parent=15 // pred_region
          %p271 = scmp.lt.s32.totalorder %s28, 1
          %s272 = scalar_select %p271, %s28, 1
          %p273 = scmp.lt.s32.totalorder %s29, 1
          %s274 = scalar_select %p273, %s29, 1
          %s275 = smul.addr %s274, 4
          %s276 = smul.addr %s272, 8
          %s277 = sadd.s32 %s275, %s276
          %s278 = smul.addr %s277, 2
          %s279 = scalar_lea.vmem %s4, %s278
        $region32: #{tpu_custom_call.1} parent=15 // pred_fallthru
          _
        // Predicated region
        $region33: #{tpu_custom_call.1} parent=15 // pred_check
          %p280 = pneg %p174
        $region34: #{tpu_custom_call.1} parent=15 // pred_check_branch
          %282 = sbr.rel (%p280) target = $region36
        $region35: #{tpu_custom_call.1} parent=15 // pred_region
          %s283 = smul.u32 2, %s30
          %p284 = scmp.lt.s32.totalorder %s283, 3
          %s285 = scalar_select %p284, %s283, 3
          %s286 = smul.addr %s285, 4
          %s287 = scalar_lea.vmem %s5, %s286
          %s288 = smul.u32 2, %s30
        $region36: #{tpu_custom_call.1} parent=15 // pred_fallthru
          _
      $region16: #{tpu_custom_call.1} parent=5 // pred_fallthru
        _
      %p289 = scmp.le.s32.totalorder 1, %s21
      %p290 = scmp.lt.s32.totalorder %s21, 9
      %p291 = pnand %p289, %p290
      %p292 = pneg %p291
      // Predicated region
      $region37: #{tpu_custom_call.1} parent=5 // pred_check
        _
      $region38: #{tpu_custom_call.1} parent=5 // pred_check_branch
        %294 = sbr.rel (%p291) target = $region40
      $region39: #{tpu_custom_call.1} parent=5 // pred_region
        %s295 = ssub.s32 %s21, 1
        %s296 = smul.u32 2, %s33
        %p297 = scmp.lt.s32.totalorder %s31, 1
        %s298 = scalar_select %p297, %s31, 1
        %p299 = scmp.lt.s32.totalorder %s296, 3
        %s300 = scalar_select %p299, %s296, 3
        %s301 = smul.addr %s298, 4
        %s302 = sadd.s32 %s300, %s301
        %s303 = smul.addr %s302, 4
        %s304 = scalar_lea.vmem %s1, %s303
        %p305 = pneg %p68
        %p306 = pneg %p65
        %s307 = smul.u32 2, %s33
        %p308 = scmp.lt.s32.totalorder %s31, 1
        %s309 = scalar_select %p308, %s31, 1
        %p310 = scmp.lt.s32.totalorder %s307, 3
        %s311 = scalar_select %p310, %s307, 3
        %s312 = smul.addr %s309, 4
        %s313 = sadd.s32 %s311, %s312
        %s314 = scalar_lea.vmem %s2, %s313
        %p315 = pneg %p96
        %p316 = pneg %p93
        %s317 = smul.u32 2, %s33
        %p318 = scmp.lt.s32.totalorder %s31, 1
        %s319 = scalar_select %p318, %s31, 1
        %p320 = scmp.lt.s32.totalorder %s32, 1
        %s321 = scalar_select %p320, %s32, 1
        %p322 = scmp.lt.s32.totalorder %s317, 3
        %s323 = scalar_select %p322, %s317, 3
        %s324 = smul.addr %s321, 4
        %s325 = sadd.s32 %s323, %s324
        %s326 = smul.addr %s319, 8
        %s327 = sadd.s32 %s325, %s326
        %s328 = scalar_lea.vmem %s3, %s327
        %p329 = pneg %p126
        %p330 = pneg %p123
        %p331 = scmp.lt.s32.totalorder %s31, 1
        %s332 = scalar_select %p331, %s31, 1
        %p333 = scmp.lt.s32.totalorder %s32, 1
        %s334 = scalar_select %p333, %s32, 1
        %s335 = smul.addr %s334, 4
        %s336 = smul.addr %s332, 8
        %s337 = sadd.s32 %s335, %s336
        %s338 = smul.addr %s337, 2
        %s339 = scalar_lea.vmem %s4, %s338
        %p340 = pneg %p154
        %p341 = pneg %p151
        %s342 = smul.u32 2, %s33
        %p343 = scmp.lt.s32.totalorder %s342, 3
        %s344 = scalar_select %p343, %s342, 3
        %s345 = smul.addr %s344, 4
        %s346 = scalar_lea.vmem %s5, %s345
        %p347 = pneg %p180
        %p348 = pneg %p177
        %p349 = pneg %p208
        %p350 = pneg %p205
        %s351 = sand.u32 %s195, 1
        %s352 = scalar_lea.sflag [#allocation5], %s351
        %s353 = sand.u32 %s195, 1
        %s354 = smul.addr %s353, 8
        %s355 = scalar_lea.vmem [#allocation4], %s354
        %s356 = smul.u32 2, %s33
        %p357 = scmp.lt.s32.totalorder %s31, 1
        %s358 = scalar_select %p357, %s31, 1
        %p359 = scmp.lt.s32.totalorder %s356, 3
        %s360 = scalar_select %p359, %s356, 3
        %s361 = smul.addr %s358, 4
        %s362 = sadd.s32 %s360, %s361
        %s363 = smul.addr %s362, 4
        %s364 = scalar_lea.vmem %s1, %s363
        %s365 = smul.u32 2, %s33
        %s366 = smul.u32 2, %s33
        %p367 = scmp.lt.s32.totalorder %s31, 1
        %s368 = scalar_select %p367, %s31, 1
        %p369 = scmp.lt.s32.totalorder %s366, 3
        %s370 = scalar_select %p369, %s366, 3
        %s371 = smul.addr %s368, 4
        %s372 = sadd.s32 %s370, %s371
        %s373 = scalar_lea.vmem %s2, %s372
        %s374 = smul.u32 2, %s33
        %s375 = smul.u32 2, %s33
        %p376 = scmp.lt.s32.totalorder %s31, 1
        %s377 = scalar_select %p376, %s31, 1
        %p378 = scmp.lt.s32.totalorder %s32, 1
        %s379 = scalar_select %p378, %s32, 1
        %p380 = scmp.lt.s32.totalorder %s375, 3
        %s381 = scalar_select %p380, %s375, 3
        %s382 = smul.addr %s379, 4
        %s383 = sadd.s32 %s381, %s382
        %s384 = smul.addr %s377, 8
        %s385 = sadd.s32 %s383, %s384
        %s386 = scalar_lea.vmem %s3, %s385
        %s387 = smul.u32 2, %s33
        %p388 = scmp.lt.s32.totalorder %s31, 1
        %s389 = scalar_select %p388, %s31, 1
        %p390 = scmp.lt.s32.totalorder %s32, 1
        %s391 = scalar_select %p390, %s32, 1
        %s392 = smul.addr %s391, 4
        %s393 = smul.addr %s389, 8
        %s394 = sadd.s32 %s392, %s393
        %s395 = smul.addr %s394, 2
        %s396 = scalar_lea.vmem %s4, %s395
        %s397 = smul.u32 2, %s33
        %p398 = scmp.lt.s32.totalorder %s397, 3
        %s399 = scalar_select %p398, %s397, 3
        %s400 = smul.addr %s399, 4
        %s401 = scalar_lea.vmem %s5, %s400
        %s402 = smul.u32 2, %s33
        %p403 = scmp.eq.s32.totalorder %s33, 0
        // Predicated region
        $region41: #{tpu_custom_call.1} parent=39 // pred_check
          %p404 = pneg %p403
        $region42: #{tpu_custom_call.1} parent=39 // pred_check_branch
          %406 = sbr.rel (%p404) target = $region44
        $region43: #{tpu_custom_call.1} parent=39 // pred_region
          %407 = vst [vmem:[%s355] sm:$0xff] 0.0
        $region44: #{tpu_custom_call.1} parent=39 // pred_fallthru
          _
        %v408 = vld [vmem:[%s401] sm:$0x77]
        %v409 = vld [vmem:[%s373] sm:$0x3]
        %s410 = smul.u32 %s31, 2
        %s411 = sadd.s32 %s32, %s410
        %s412 = smul.u32 %s411, 128
        %s413 = sadd.s32 %s412, 3
        %s414 = sld [smem:[#allocation3 + %s413]]
        %v415 = vstv %s414
        %v416 = vmul.f32 %v415, %v408
        %s417 = sadd.s32 %s412, 4
        %s418 = sld [smem:[#allocation3 + %s417]]
        %v419 = vstv %s418
        %v420 = vmul.f32 %v419, %v408
        %v422 = vrot.slane %v420, 5
        %v423 = vrot.slane %v422, 4
        %v425 = vadd.f32 %v416, %v423
        %s426 = sadd.s32 %s412, 5
        %s427 = sld [smem:[#allocation3 + %s426]]
        %v428 = vstv %s427
        %v429 = vmul.f32 %v428, %v408
        %v431 = vrot.slane %v429, 6
        %v432 = vrot.slane %v431, 4
        %v434 = vadd.f32 %v425, %v432
        %v437 = vunpack.c.l.s4 286326784
        %v438 = vunpack.c.0.s8 %v437
        %v439 = vlaneseq
        %v440 = vshrl.u32 %v439, 7
        %v441 = vsub.s32 %v438, %v440
        %v442 = vrot.slane %v409, %v441
        %v444 = vmul.f32 %v434, %v442
        %s445 = sld [smem:[#allocation3 + %s412]]
        %v446 = vstv %s445
        %v447 = vadd.f32 %v444, %v446
        %s448 = sadd.s32 %s412, 6
        %s449 = sld [smem:[#allocation3 + %s448]]
        %v450 = vstv %s449
        %v451 = vmul.f32 %v450, %v408
        %s452 = sadd.s32 %s412, 7
        %s453 = sld [smem:[#allocation3 + %s452]]
        %v454 = vstv %s453
        %v455 = vmul.f32 %v454, %v408
        %v457 = vrot.slane %v455, 5
        %v458 = vrot.slane %v457, 4
        %v460 = vadd.f32 %v451, %v458
        %s461 = sadd.s32 %s412, 8
        %s462 = sld [smem:[#allocation3 + %s461]]
        %v463 = vstv %s462
        %v464 = vmul.f32 %v463, %v408
        %v466 = vrot.slane %v464, 6
        %v467 = vrot.slane %v466, 4
        %v469 = vadd.f32 %v460, %v467
        %v470 = vmul.f32 %v469, %v442
        %s471 = sadd.s32 %s412, 1
        %s472 = sld [smem:[#allocation3 + %s471]]
        %v473 = vstv %s472
        %v474 = vadd.f32 %v470, %v473
        %s475 = sadd.s32 %s412, 9
        %s476 = sld [smem:[#allocation3 + %s475]]
        %v477 = vstv %s476
        %v478 = vmul.f32 %v477, %v408
        %s479 = sadd.s32 %s412, 10
        %s480 = sld [smem:[#allocation3 + %s479]]
        %v481 = vstv %s480
        %v482 = vmul.f32 %v481, %v408
        %v484 = vrot.slane %v482, 5
        %v485 = vrot.slane %v484, 4
        %v487 = vadd.f32 %v478, %v485
        %s488 = sadd.s32 %s412, 11
        %s489 = sld [smem:[#allocation3 + %s488]]
        %v490 = vstv %s489
        %v491 = vmul.f32 %v490, %v408
        %v493 = vrot.slane %v491, 6
        %v494 = vrot.slane %v493, 4
        %v496 = vadd.f32 %v487, %v494
        %v497 = vmul.f32 %v496, %v442
        %s498 = sadd.s32 %s412, 2
        %s499 = sld [smem:[#allocation3 + %s498]]
        %v500 = vstv %s499
        %v501 = vadd.f32 %v497, %v500
        %v502 = vand.u32 2147483647, %v447
        %v503 = vand.u32 2147483647, %v501
        %v504 = vmax.f32 %v503, %v502
        %v505 = vmin.f32 %v503, %v502
        %v506 = vmax.f32 %v504, 1e-30
        %v507 = vrcp.pop %v506
        %v508 = vmul.f32 %v505, %v507
        %v509 = vmul.f32 %v508, %v508
        %v510 = vadd.f32 %v509, 1.0
        %v511 = vrsqrt.pop %v510
        %v512 = vmul.f32 %v510, %v511
        %vm513 = vcmp.eq.f32.partialorder %v510, inf
        %v514 = vsel %vm513, %v510, %v512
        %vm515 = vcmp.eq.f32.partialorder %v510, 0.0
        %v516 = vand.u32 %v510, 2147483648
        %v517 = vsel %vm515, %v516, %v514
        %v518 = vadd.f32 %v517, 1.0
        %v519 = vrcp.pop %v518
        %v520 = vmul.f32 %v508, %v519
        %v521 = vmul.f32 %v520, %v520
        %v522 = vadd.f32 %v521, 1.0
        %v523 = vrsqrt.pop %v522
        %v524 = vmul.f32 %v522, %v523
        %vm525 = vcmp.eq.f32.partialorder %v522, inf
        %v526 = vsel %vm525, %v522, %v524
        %vm527 = vcmp.eq.f32.partialorder %v522, 0.0
        %v528 = vand.u32 %v522, 2147483648
        %v529 = vsel %vm527, %v528, %v526
        %v530 = vadd.f32 %v529, 1.0
        %v531 = vrcp.pop %v530
        %v532 = vmul.f32 %v520, %v531
        %v533 = vmul.f32 %v532, %v532
        %v534 = vmul.f32 %v533, 0.11111111
        %v535 = vadd.f32 %v534, -0.14285715
        %v536 = vmul.f32 %v533, %v535
        %v537 = vadd.f32 %v536, 0.2
        %v538 = vmul.f32 %v533, %v537
        %v539 = vadd.f32 %v538, -0.33333334
        %v540 = vmul.f32 %v533, %v539
        %v541 = vadd.f32 %v540, 1.0
        %v542 = vmul.f32 %v532, %v541
        %v543 = vmul.f32 %v542, 4.0
        %vm544 = vcmp.gt.f32.partialorder %v502, %v503
        %v545 = vsub.f32 1.5707964, %v543
        %v546 = vsel %vm544, %v545, %v543
        %vm547 = vcmp.lt.f32.partialorder %v501, 0.0
        %v548 = vsub.f32 3.1415927, %v546
        %v549 = vsel %vm547, %v548, %v546
        %vm550 = vcmp.lt.f32.partialorder %v447, 0.0
        %v551 = vsub.f32 0.0, %v549
        %v552 = vsel %vm550, %v551, %v549
        %v553 = vmul.f32 %v447, %v447
        %v554 = vmul.f32 %v501, %v501
        %v555 = vadd.f32 %v553, %v554
        %v556 = vrsqrt.pop %v555
        %v557 = vmul.f32 %v555, %v556
        %vm558 = vcmp.eq.f32.partialorder %v555, inf
        %v559 = vsel %vm558, %v555, %v557
        %vm560 = vcmp.eq.f32.partialorder %v555, 0.0
        %v561 = vand.u32 %v555, 2147483648
        %v562 = vsel %vm560, %v561, %v559
        %v563 = vand.u32 2147483647, %v474
        %v564 = vand.u32 2147483647, %v562
        %v565 = vmax.f32 %v564, %v563
        %v566 = vmin.f32 %v564, %v563
        %v567 = vmax.f32 %v565, 1e-30
        %v568 = vrcp.pop %v567
        %v569 = vmul.f32 %v566, %v568
        %v570 = vmul.f32 %v569, %v569
        %v571 = vadd.f32 %v570, 1.0
        %v572 = vrsqrt.pop %v571
        %v573 = vmul.f32 %v571, %v572
        %vm574 = vcmp.eq.f32.partialorder %v571, inf
        %v575 = vsel %vm574, %v571, %v573
        %vm576 = vcmp.eq.f32.partialorder %v571, 0.0
        %v577 = vand.u32 %v571, 2147483648
        %v578 = vsel %vm576, %v577, %v575
        %v579 = vadd.f32 %v578, 1.0
        %v580 = vrcp.pop %v579
        %v581 = vmul.f32 %v569, %v580
        %v582 = vmul.f32 %v581, %v581
        %v583 = vadd.f32 %v582, 1.0
        %v584 = vrsqrt.pop %v583
        %v585 = vmul.f32 %v583, %v584
        %vm586 = vcmp.eq.f32.partialorder %v583, inf
        %v587 = vsel %vm586, %v583, %v585
        %vm588 = vcmp.eq.f32.partialorder %v583, 0.0
        %v589 = vand.u32 %v583, 2147483648
        %v590 = vsel %vm588, %v589, %v587
        %v591 = vadd.f32 %v590, 1.0
        %v592 = vrcp.pop %v591
        %v593 = vmul.f32 %v581, %v592
        %v594 = vmul.f32 %v593, %v593
        %v595 = vmul.f32 %v594, 0.11111111
        %v596 = vadd.f32 %v595, -0.14285715
        %v597 = vmul.f32 %v594, %v596
        %v598 = vadd.f32 %v597, 0.2
        %v599 = vmul.f32 %v594, %v598
        %v600 = vadd.f32 %v599, -0.33333334
        %v601 = vmul.f32 %v594, %v600
        %v602 = vadd.f32 %v601, 1.0
        %v603 = vmul.f32 %v593, %v602
        %v604 = vmul.f32 %v603, 4.0
        %vm605 = vcmp.gt.f32.partialorder %v563, %v564
        %v606 = vsub.f32 1.5707964, %v604
        %v607 = vsel %vm605, %v606, %v604
        %vm608 = vcmp.lt.f32.partialorder %v562, 0.0
        %v609 = vsub.f32 3.1415927, %v607
        %v610 = vsel %vm608, %v609, %v607
        %vm611 = vcmp.lt.f32.partialorder %v474, 0.0
        %v612 = vsub.f32 0.0, %v610
        %v613 = vsel %vm611, %v612, %v610
        %v614 = vmul.f32 %v552, 0.31830987
        %v615 = vadd.f32 %v614, 1.0
        %v616 = vmul.f32 %v615, 15.5
        %v617 = vmul.f32 %v613, 0.63661975
        %v618 = vadd.f32 %v617, 1.0
        %v619 = vmul.f32 %v618, 7.5
        %v620 = vfloor.f32 %v616
        %v621 = vfloor.f32 %v619
        %v622 = vsub.f32 %v616, %v620
        %v623 = vsub.f32 %v619, %v621
        %v624 = vcvt.f32.s32.to.zero.pseudo %v620
        %v625 = vcvt.f32.s32.to.zero.pseudo %v621
        %vm626 = vcmp.ge.s32.totalorder %v624, 0
        %vm627 = vcmp.le.s32.totalorder %v624, 31
        %vm628 = vmand %vm626, %vm627
        %v629 = vsel %vm628, 1, 0
        %v630 = vcvt.s32.f32 %v629
        %vm631 = vcmp.ge.s32.totalorder %v624, 4294967295
        %vm632 = vcmp.le.s32.totalorder %v624, 30
        %vm633 = vmand %vm631, %vm632
        %v634 = vsel %vm633, 1, 0
        %v635 = vcvt.s32.f32 %v634
        %vm636 = vcmp.ge.s32.totalorder %v625, 0
        %vm637 = vcmp.le.s32.totalorder %v625, 15
        %vm638 = vmand %vm636, %vm637
        %v639 = vsel %vm638, 1, 0
        %v640 = vcvt.s32.f32 %v639
        %vm641 = vcmp.ge.s32.totalorder %v625, 4294967295
        %vm642 = vcmp.le.s32.totalorder %v625, 14
        %vm643 = vmand %vm641, %vm642
        %v644 = vsel %vm643, 1, 0
        %v645 = vcvt.s32.f32 %v644
        %v646 = vsub.f32 1.0, %v622
        %v647 = vsub.f32 1.0, %v623
        %v648 = vmul.f32 %v646, %v647
        %v649 = vmul.f32 %v648, %v630
        %v650 = vmul.f32 %v649, %v640
        %v651 = vmul.f32 %v622, %v647
        %v652 = vmul.f32 %v651, %v635
        %v653 = vmul.f32 %v652, %v640
        %v654 = vmul.f32 %v646, %v623
        %v655 = vmul.f32 %v654, %v630
        %v656 = vmul.f32 %v655, %v645
        %v657 = vmul.f32 %v622, %v623
        %v658 = vmul.f32 %v657, %v635
        %v659 = vmul.f32 %v658, %v645
        %v660 = vmul.u32 %v625, 32
        %v661 = vadd.s32 %v660, %v624
        %v662 = vlaneseq
        %v663 = vshrl.u32 %v662, 7
        %v664 = vadd.s32 %v663, 8
        %v665 = vadd.s32 %v663, 16
        %v666 = vadd.s32 %v663, 24
        %v667 = vadd.s32 %v663, 32
        %v668 = vadd.s32 %v663, 40
        %v669 = vadd.s32 %v663, 48
        %v670 = vadd.s32 %v663, 56
        %v671 = vadd.s32 %v663, 64
        %v672 = vadd.s32 %v663, 72
        %v673 = vadd.s32 %v663, 80
        %v674 = vadd.s32 %v663, 88
        %v675 = vadd.s32 %v663, 96
        %v676 = vadd.s32 %v663, 104
        %v677 = vadd.s32 %v663, 112
        %v678 = vadd.s32 %v663, 120
        %v679 = vadd.s32 %v663, 128
        %v680 = vadd.s32 %v663, 136
        %v681 = vadd.s32 %v663, 144
        %v682 = vadd.s32 %v663, 152
        %v683 = vadd.s32 %v663, 160
        %v684 = vadd.s32 %v663, 168
        %v685 = vadd.s32 %v663, 176
        %v686 = vadd.s32 %v663, 184
        %v687 = vadd.s32 %v663, 192
        %v688 = vadd.s32 %v663, 200
        %v689 = vadd.s32 %v663, 208
        %v690 = vadd.s32 %v663, 216
        %v691 = vadd.s32 %v663, 224
        %v692 = vadd.s32 %v663, 232
        %v693 = vadd.s32 %v663, 240
        %v694 = vadd.s32 %v663, 248
        %v695 = vadd.s32 %v663, 256
        %v696 = vadd.s32 %v663, 264
        %v697 = vadd.s32 %v663, 272
        %v698 = vadd.s32 %v663, 280
        %v699 = vadd.s32 %v663, 288
        %v700 = vadd.s32 %v663, 296
        %v701 = vadd.s32 %v663, 304
        %v702 = vadd.s32 %v663, 312
        %v703 = vadd.s32 %v663, 320
        %v704 = vadd.s32 %v663, 328
        %v705 = vadd.s32 %v663, 336
        %v706 = vadd.s32 %v663, 344
        %v707 = vadd.s32 %v663, 352
        %v708 = vadd.s32 %v663, 360
        %v709 = vadd.s32 %v663, 368
        %v710 = vadd.s32 %v663, 376
        %v711 = vadd.s32 %v663, 384
        %v712 = vadd.s32 %v663, 392
        %v713 = vadd.s32 %v663, 400
        %v714 = vadd.s32 %v663, 408
        %v715 = vadd.s32 %v663, 416
        %v716 = vadd.s32 %v663, 424
        %v717 = vadd.s32 %v663, 432
        %v718 = vadd.s32 %v663, 440
        %v719 = vadd.s32 %v663, 448
        %v720 = vadd.s32 %v663, 456
        %v721 = vadd.s32 %v663, 464
        %v722 = vadd.s32 %v663, 472
        %v723 = vadd.s32 %v663, 480
        %v724 = vadd.s32 %v663, 488
        %v725 = vadd.s32 %v663, 496
        %v726 = vadd.s32 %v663, 504
        %v727 = vlaneseq
        %v728 = vshrl.u32 %v727, 7
        %v729 = vsub.s32 0, %v728
        %v730 = vrot.slane %v661, %v729
        %v731 = vlaneseq
        %v732 = vshrl.u32 %v731, 7
        %v733 = vsub.s32 4, %v732
        %v734 = vrot.slane %v661, %v733
        %v735 = vlaneseq
        %v736 = vshrl.u32 %v735, 7
        %v737 = vsub.s32 0, %v736
        %v738 = vrot.slane %v730, %v737
        %v739 = vlaneseq
        %v740 = vshrl.u32 %v739, 7
        %v741 = vsub.s32 0, %v740
        %v742 = vrot.slane %v734, %v741
        %vm743 = vcmp.eq.s32.totalorder %v663, %v738
        %vm744 = vcmp.eq.s32.totalorder %v663, %v742
        %vm745 = vcmp.eq.s32.totalorder %v664, %v738
        %vm746 = vcmp.eq.s32.totalorder %v664, %v742
        %vm747 = vcmp.eq.s32.totalorder %v665, %v738
        %vm748 = vcmp.eq.s32.totalorder %v665, %v742
        %vm749 = vcmp.eq.s32.totalorder %v666, %v738
        %vm750 = vcmp.eq.s32.totalorder %v666, %v742
        %vm751 = vcmp.eq.s32.totalorder %v667, %v738
        %vm752 = vcmp.eq.s32.totalorder %v667, %v742
        %vm753 = vcmp.eq.s32.totalorder %v668, %v738
        %vm754 = vcmp.eq.s32.totalorder %v668, %v742
        %vm755 = vcmp.eq.s32.totalorder %v669, %v738
        %vm756 = vcmp.eq.s32.totalorder %v669, %v742
        %vm757 = vcmp.eq.s32.totalorder %v670, %v738
        %vm758 = vcmp.eq.s32.totalorder %v670, %v742
        %vm759 = vcmp.eq.s32.totalorder %v671, %v738
        %vm760 = vcmp.eq.s32.totalorder %v671, %v742
        %vm761 = vcmp.eq.s32.totalorder %v672, %v738
        %vm762 = vcmp.eq.s32.totalorder %v672, %v742
        %vm763 = vcmp.eq.s32.totalorder %v673, %v738
        %vm764 = vcmp.eq.s32.totalorder %v673, %v742
        %vm765 = vcmp.eq.s32.totalorder %v674, %v738
        %vm766 = vcmp.eq.s32.totalorder %v674, %v742
        %vm767 = vcmp.eq.s32.totalorder %v675, %v738
        %vm768 = vcmp.eq.s32.totalorder %v675, %v742
        %vm769 = vcmp.eq.s32.totalorder %v676, %v738
        %vm770 = vcmp.eq.s32.totalorder %v676, %v742
        %vm771 = vcmp.eq.s32.totalorder %v677, %v738
        %vm772 = vcmp.eq.s32.totalorder %v677, %v742
        %vm773 = vcmp.eq.s32.totalorder %v678, %v738
        %vm774 = vcmp.eq.s32.totalorder %v678, %v742
        %vm775 = vcmp.eq.s32.totalorder %v679, %v738
        %vm776 = vcmp.eq.s32.totalorder %v679, %v742
        %vm777 = vcmp.eq.s32.totalorder %v680, %v738
        %vm778 = vcmp.eq.s32.totalorder %v680, %v742
        %vm779 = vcmp.eq.s32.totalorder %v681, %v738
        %vm780 = vcmp.eq.s32.totalorder %v681, %v742
        %vm781 = vcmp.eq.s32.totalorder %v682, %v738
        %vm782 = vcmp.eq.s32.totalorder %v682, %v742
        %vm783 = vcmp.eq.s32.totalorder %v683, %v738
        %vm784 = vcmp.eq.s32.totalorder %v683, %v742
        %vm785 = vcmp.eq.s32.totalorder %v684, %v738
        %vm786 = vcmp.eq.s32.totalorder %v684, %v742
        %vm787 = vcmp.eq.s32.totalorder %v685, %v738
        %vm788 = vcmp.eq.s32.totalorder %v685, %v742
        %vm789 = vcmp.eq.s32.totalorder %v686, %v738
        %vm790 = vcmp.eq.s32.totalorder %v686, %v742
        %vm791 = vcmp.eq.s32.totalorder %v687, %v738
        %vm792 = vcmp.eq.s32.totalorder %v687, %v742
        %vm793 = vcmp.eq.s32.totalorder %v688, %v738
        %vm794 = vcmp.eq.s32.totalorder %v688, %v742
        %vm795 = vcmp.eq.s32.totalorder %v689, %v738
        %vm796 = vcmp.eq.s32.totalorder %v689, %v742
        %vm797 = vcmp.eq.s32.totalorder %v690, %v738
        %vm798 = vcmp.eq.s32.totalorder %v690, %v742
        %vm799 = vcmp.eq.s32.totalorder %v691, %v738
        %vm800 = vcmp.eq.s32.totalorder %v691, %v742
        %vm801 = vcmp.eq.s32.totalorder %v692, %v738
        %vm802 = vcmp.eq.s32.totalorder %v692, %v742
        %vm803 = vcmp.eq.s32.totalorder %v693, %v738
        %vm804 = vcmp.eq.s32.totalorder %v693, %v742
        %vm805 = vcmp.eq.s32.totalorder %v694, %v738
        %vm806 = vcmp.eq.s32.totalorder %v694, %v742
        %vm807 = vcmp.eq.s32.totalorder %v695, %v738
        %vm808 = vcmp.eq.s32.totalorder %v695, %v742
        %vm809 = vcmp.eq.s32.totalorder %v696, %v738
        %vm810 = vcmp.eq.s32.totalorder %v696, %v742
        %vm811 = vcmp.eq.s32.totalorder %v697, %v738
        %vm812 = vcmp.eq.s32.totalorder %v697, %v742
        %vm813 = vcmp.eq.s32.totalorder %v698, %v738
        %vm814 = vcmp.eq.s32.totalorder %v698, %v742
        %vm815 = vcmp.eq.s32.totalorder %v699, %v738
        %vm816 = vcmp.eq.s32.totalorder %v699, %v742
        %vm817 = vcmp.eq.s32.totalorder %v700, %v738
        %vm818 = vcmp.eq.s32.totalorder %v700, %v742
        %vm819 = vcmp.eq.s32.totalorder %v701, %v738
        %vm820 = vcmp.eq.s32.totalorder %v701, %v742
        %vm821 = vcmp.eq.s32.totalorder %v702, %v738
        %vm822 = vcmp.eq.s32.totalorder %v702, %v742
        %vm823 = vcmp.eq.s32.totalorder %v703, %v738
        %vm824 = vcmp.eq.s32.totalorder %v703, %v742
        %vm825 = vcmp.eq.s32.totalorder %v704, %v738
        %vm826 = vcmp.eq.s32.totalorder %v704, %v742
        %vm827 = vcmp.eq.s32.totalorder %v705, %v738
        %vm828 = vcmp.eq.s32.totalorder %v705, %v742
        %vm829 = vcmp.eq.s32.totalorder %v706, %v738
        %vm830 = vcmp.eq.s32.totalorder %v706, %v742
        %vm831 = vcmp.eq.s32.totalorder %v707, %v738
        %vm832 = vcmp.eq.s32.totalorder %v707, %v742
        %vm833 = vcmp.eq.s32.totalorder %v708, %v738
        %vm834 = vcmp.eq.s32.totalorder %v708, %v742
        %vm835 = vcmp.eq.s32.totalorder %v709, %v738
        %vm836 = vcmp.eq.s32.totalorder %v709, %v742
        %vm837 = vcmp.eq.s32.totalorder %v710, %v738
        %vm838 = vcmp.eq.s32.totalorder %v710, %v742
        %vm839 = vcmp.eq.s32.totalorder %v711, %v738
        %vm840 = vcmp.eq.s32.totalorder %v711, %v742
        %vm841 = vcmp.eq.s32.totalorder %v712, %v738
        %vm842 = vcmp.eq.s32.totalorder %v712, %v742
        %vm843 = vcmp.eq.s32.totalorder %v713, %v738
        %vm844 = vcmp.eq.s32.totalorder %v713, %v742
        %vm845 = vcmp.eq.s32.totalorder %v714, %v738
        %vm846 = vcmp.eq.s32.totalorder %v714, %v742
        %vm847 = vcmp.eq.s32.totalorder %v715, %v738
        %vm848 = vcmp.eq.s32.totalorder %v715, %v742
        %vm849 = vcmp.eq.s32.totalorder %v716, %v738
        %vm850 = vcmp.eq.s32.totalorder %v716, %v742
        %vm851 = vcmp.eq.s32.totalorder %v717, %v738
        %vm852 = vcmp.eq.s32.totalorder %v717, %v742
        %vm853 = vcmp.eq.s32.totalorder %v718, %v738
        %vm854 = vcmp.eq.s32.totalorder %v718, %v742
        %vm855 = vcmp.eq.s32.totalorder %v719, %v738
        %vm856 = vcmp.eq.s32.totalorder %v719, %v742
        %vm857 = vcmp.eq.s32.totalorder %v720, %v738
        %vm858 = vcmp.eq.s32.totalorder %v720, %v742
        %vm859 = vcmp.eq.s32.totalorder %v721, %v738
        %vm860 = vcmp.eq.s32.totalorder %v721, %v742
        %vm861 = vcmp.eq.s32.totalorder %v722, %v738
        %vm862 = vcmp.eq.s32.totalorder %v722, %v742
        %vm863 = vcmp.eq.s32.totalorder %v723, %v738
        %vm864 = vcmp.eq.s32.totalorder %v723, %v742
        %vm865 = vcmp.eq.s32.totalorder %v724, %v738
        %vm866 = vcmp.eq.s32.totalorder %v724, %v742
        %vm867 = vcmp.eq.s32.totalorder %v725, %v738
        %vm868 = vcmp.eq.s32.totalorder %v725, %v742
        %vm869 = vcmp.eq.s32.totalorder %v726, %v738
        %vm870 = vcmp.eq.s32.totalorder %v726, %v742
        %v871 = vadd.s32 %v661, 1
        %v872 = vlaneseq
        %v873 = vshrl.u32 %v872, 7
        %v874 = vsub.s32 0, %v873
        %v875 = vrot.slane %v871, %v874
        %v876 = vlaneseq
        %v877 = vshrl.u32 %v876, 7
        %v878 = vsub.s32 4, %v877
        %v879 = vrot.slane %v871, %v878
        %v880 = vlaneseq
        %v881 = vshrl.u32 %v880, 7
        %v882 = vsub.s32 0, %v881
        %v883 = vrot.slane %v875, %v882
        %v884 = vlaneseq
        %v885 = vshrl.u32 %v884, 7
        %v886 = vsub.s32 0, %v885
        %v887 = vrot.slane %v879, %v886
        %vm888 = vcmp.eq.s32.totalorder %v663, %v883
        %vm889 = vcmp.eq.s32.totalorder %v663, %v887
        %vm890 = vcmp.eq.s32.totalorder %v664, %v883
        %vm891 = vcmp.eq.s32.totalorder %v664, %v887
        %vm892 = vcmp.eq.s32.totalorder %v665, %v883
        %vm893 = vcmp.eq.s32.totalorder %v665, %v887
        %vm894 = vcmp.eq.s32.totalorder %v666, %v883
        %vm895 = vcmp.eq.s32.totalorder %v666, %v887
        %vm896 = vcmp.eq.s32.totalorder %v667, %v883
        %vm897 = vcmp.eq.s32.totalorder %v667, %v887
        %vm898 = vcmp.eq.s32.totalorder %v668, %v883
        %vm899 = vcmp.eq.s32.totalorder %v668, %v887
        %vm900 = vcmp.eq.s32.totalorder %v669, %v883
        %vm901 = vcmp.eq.s32.totalorder %v669, %v887
        %vm902 = vcmp.eq.s32.totalorder %v670, %v883
        %vm903 = vcmp.eq.s32.totalorder %v670, %v887
        %vm904 = vcmp.eq.s32.totalorder %v671, %v883
        %vm905 = vcmp.eq.s32.totalorder %v671, %v887
        %vm906 = vcmp.eq.s32.totalorder %v672, %v883
        %vm907 = vcmp.eq.s32.totalorder %v672, %v887
        %vm908 = vcmp.eq.s32.totalorder %v673, %v883
        %vm909 = vcmp.eq.s32.totalorder %v673, %v887
        %vm910 = vcmp.eq.s32.totalorder %v674, %v883
        %vm911 = vcmp.eq.s32.totalorder %v674, %v887
        %vm912 = vcmp.eq.s32.totalorder %v675, %v883
        %vm913 = vcmp.eq.s32.totalorder %v675, %v887
        %vm914 = vcmp.eq.s32.totalorder %v676, %v883
        %vm915 = vcmp.eq.s32.totalorder %v676, %v887
        %vm916 = vcmp.eq.s32.totalorder %v677, %v883
        %vm917 = vcmp.eq.s32.totalorder %v677, %v887
        %vm918 = vcmp.eq.s32.totalorder %v678, %v883
        %vm919 = vcmp.eq.s32.totalorder %v678, %v887
        %vm920 = vcmp.eq.s32.totalorder %v679, %v883
        %vm921 = vcmp.eq.s32.totalorder %v679, %v887
        %vm922 = vcmp.eq.s32.totalorder %v680, %v883
        %vm923 = vcmp.eq.s32.totalorder %v680, %v887
        %vm924 = vcmp.eq.s32.totalorder %v681, %v883
        %vm925 = vcmp.eq.s32.totalorder %v681, %v887
        %vm926 = vcmp.eq.s32.totalorder %v682, %v883
        %vm927 = vcmp.eq.s32.totalorder %v682, %v887
        %vm928 = vcmp.eq.s32.totalorder %v683, %v883
        %vm929 = vcmp.eq.s32.totalorder %v683, %v887
        %vm930 = vcmp.eq.s32.totalorder %v684, %v883
        %vm931 = vcmp.eq.s32.totalorder %v684, %v887
        %vm932 = vcmp.eq.s32.totalorder %v685, %v883
        %vm933 = vcmp.eq.s32.totalorder %v685, %v887
        %vm934 = vcmp.eq.s32.totalorder %v686, %v883
        %vm935 = vcmp.eq.s32.totalorder %v686, %v887
        %vm936 = vcmp.eq.s32.totalorder %v687, %v883
        %vm937 = vcmp.eq.s32.totalorder %v687, %v887
        %vm938 = vcmp.eq.s32.totalorder %v688, %v883
        %vm939 = vcmp.eq.s32.totalorder %v688, %v887
        %vm940 = vcmp.eq.s32.totalorder %v689, %v883
        %vm941 = vcmp.eq.s32.totalorder %v689, %v887
        %vm942 = vcmp.eq.s32.totalorder %v690, %v883
        %vm943 = vcmp.eq.s32.totalorder %v690, %v887
        %vm944 = vcmp.eq.s32.totalorder %v691, %v883
        %vm945 = vcmp.eq.s32.totalorder %v691, %v887
        %vm946 = vcmp.eq.s32.totalorder %v692, %v883
        %vm947 = vcmp.eq.s32.totalorder %v692, %v887
        %vm948 = vcmp.eq.s32.totalorder %v693, %v883
        %vm949 = vcmp.eq.s32.totalorder %v693, %v887
        %vm950 = vcmp.eq.s32.totalorder %v694, %v883
        %vm951 = vcmp.eq.s32.totalorder %v694, %v887
        %vm952 = vcmp.eq.s32.totalorder %v695, %v883
        %vm953 = vcmp.eq.s32.totalorder %v695, %v887
        %vm954 = vcmp.eq.s32.totalorder %v696, %v883
        %vm955 = vcmp.eq.s32.totalorder %v696, %v887
        %vm956 = vcmp.eq.s32.totalorder %v697, %v883
        %vm957 = vcmp.eq.s32.totalorder %v697, %v887
        %vm958 = vcmp.eq.s32.totalorder %v698, %v883
        %vm959 = vcmp.eq.s32.totalorder %v698, %v887
        %vm960 = vcmp.eq.s32.totalorder %v699, %v883
        %vm961 = vcmp.eq.s32.totalorder %v699, %v887
        %vm962 = vcmp.eq.s32.totalorder %v700, %v883
        %vm963 = vcmp.eq.s32.totalorder %v700, %v887
        %vm964 = vcmp.eq.s32.totalorder %v701, %v883
        %vm965 = vcmp.eq.s32.totalorder %v701, %v887
        %vm966 = vcmp.eq.s32.totalorder %v702, %v883
        %vm967 = vcmp.eq.s32.totalorder %v702, %v887
        %vm968 = vcmp.eq.s32.totalorder %v703, %v883
        %vm969 = vcmp.eq.s32.totalorder %v703, %v887
        %vm970 = vcmp.eq.s32.totalorder %v704, %v883
        %vm971 = vcmp.eq.s32.totalorder %v704, %v887
        %vm972 = vcmp.eq.s32.totalorder %v705, %v883
        %vm973 = vcmp.eq.s32.totalorder %v705, %v887
        %vm974 = vcmp.eq.s32.totalorder %v706, %v883
        %vm975 = vcmp.eq.s32.totalorder %v706, %v887
        %vm976 = vcmp.eq.s32.totalorder %v707, %v883
        %vm977 = vcmp.eq.s32.totalorder %v707, %v887
        %vm978 = vcmp.eq.s32.totalorder %v708, %v883
        %vm979 = vcmp.eq.s32.totalorder %v708, %v887
        %vm980 = vcmp.eq.s32.totalorder %v709, %v883
        %vm981 = vcmp.eq.s32.totalorder %v709, %v887
        %vm982 = vcmp.eq.s32.totalorder %v710, %v883
        %vm983 = vcmp.eq.s32.totalorder %v710, %v887
        %vm984 = vcmp.eq.s32.totalorder %v711, %v883
        %vm985 = vcmp.eq.s32.totalorder %v711, %v887
        %vm986 = vcmp.eq.s32.totalorder %v712, %v883
        %vm987 = vcmp.eq.s32.totalorder %v712, %v887
        %vm988 = vcmp.eq.s32.totalorder %v713, %v883
        %vm989 = vcmp.eq.s32.totalorder %v713, %v887
        %vm990 = vcmp.eq.s32.totalorder %v714, %v883
        %vm991 = vcmp.eq.s32.totalorder %v714, %v887
        %vm992 = vcmp.eq.s32.totalorder %v715, %v883
        %vm993 = vcmp.eq.s32.totalorder %v715, %v887
        %vm994 = vcmp.eq.s32.totalorder %v716, %v883
        %vm995 = vcmp.eq.s32.totalorder %v716, %v887
        %vm996 = vcmp.eq.s32.totalorder %v717, %v883
        %vm997 = vcmp.eq.s32.totalorder %v717, %v887
        %vm998 = vcmp.eq.s32.totalorder %v718, %v883
        %vm999 = vcmp.eq.s32.totalorder %v718, %v887
        %vm1000 = vcmp.eq.s32.totalorder %v719, %v883
        %vm1001 = vcmp.eq.s32.totalorder %v719, %v887
        %vm1002 = vcmp.eq.s32.totalorder %v720, %v883
        %vm1003 = vcmp.eq.s32.totalorder %v720, %v887
        %vm1004 = vcmp.eq.s32.totalorder %v721, %v883
        %vm1005 = vcmp.eq.s32.totalorder %v721, %v887
        %vm1006 = vcmp.eq.s32.totalorder %v722, %v883
        %vm1007 = vcmp.eq.s32.totalorder %v722, %v887
        %vm1008 = vcmp.eq.s32.totalorder %v723, %v883
        %vm1009 = vcmp.eq.s32.totalorder %v723, %v887
        %vm1010 = vcmp.eq.s32.totalorder %v724, %v883
        %vm1011 = vcmp.eq.s32.totalorder %v724, %v887
        %vm1012 = vcmp.eq.s32.totalorder %v725, %v883
        %vm1013 = vcmp.eq.s32.totalorder %v725, %v887
        %vm1014 = vcmp.eq.s32.totalorder %v726, %v883
        %vm1015 = vcmp.eq.s32.totalorder %v726, %v887
        %v1016 = vadd.s32 %v661, 32
        %v1017 = vlaneseq
        %v1018 = vshrl.u32 %v1017, 7
        %v1019 = vsub.s32 0, %v1018
        %v1020 = vrot.slane %v1016, %v1019
        %v1021 = vlaneseq
        %v1022 = vshrl.u32 %v1021, 7
        %v1023 = vsub.s32 4, %v1022
        %v1024 = vrot.slane %v1016, %v1023
        %v1025 = vlaneseq
        %v1026 = vshrl.u32 %v1025, 7
        %v1027 = vsub.s32 0, %v1026
        %v1028 = vrot.slane %v1020, %v1027
        %v1029 = vlaneseq
        %v1030 = vshrl.u32 %v1029, 7
        %v1031 = vsub.s32 0, %v1030
        %v1032 = vrot.slane %v1024, %v1031
        %vm1033 = vcmp.eq.s32.totalorder %v663, %v1028
        %vm1034 = vcmp.eq.s32.totalorder %v663, %v1032
        %vm1035 = vcmp.eq.s32.totalorder %v664, %v1028
        %vm1036 = vcmp.eq.s32.totalorder %v664, %v1032
        %vm1037 = vcmp.eq.s32.totalorder %v665, %v1028
        %vm1038 = vcmp.eq.s32.totalorder %v665, %v1032
        %vm1039 = vcmp.eq.s32.totalorder %v666, %v1028
        %vm1040 = vcmp.eq.s32.totalorder %v666, %v1032
        %vm1041 = vcmp.eq.s32.totalorder %v667, %v1028
        %vm1042 = vcmp.eq.s32.totalorder %v667, %v1032
        %vm1043 = vcmp.eq.s32.totalorder %v668, %v1028
        %vm1044 = vcmp.eq.s32.totalorder %v668, %v1032
        %vm1045 = vcmp.eq.s32.totalorder %v669, %v1028
        %vm1046 = vcmp.eq.s32.totalorder %v669, %v1032
        %vm1047 = vcmp.eq.s32.totalorder %v670, %v1028
        %vm1048 = vcmp.eq.s32.totalorder %v670, %v1032
        %vm1049 = vcmp.eq.s32.totalorder %v671, %v1028
        %vm1050 = vcmp.eq.s32.totalorder %v671, %v1032
        %vm1051 = vcmp.eq.s32.totalorder %v672, %v1028
        %vm1052 = vcmp.eq.s32.totalorder %v672, %v1032
        %vm1053 = vcmp.eq.s32.totalorder %v673, %v1028
        %vm1054 = vcmp.eq.s32.totalorder %v673, %v1032
        %vm1055 = vcmp.eq.s32.totalorder %v674, %v1028
        %vm1056 = vcmp.eq.s32.totalorder %v674, %v1032
        %vm1057 = vcmp.eq.s32.totalorder %v675, %v1028
        %vm1058 = vcmp.eq.s32.totalorder %v675, %v1032
        %vm1059 = vcmp.eq.s32.totalorder %v676, %v1028
        %vm1060 = vcmp.eq.s32.totalorder %v676, %v1032
        %vm1061 = vcmp.eq.s32.totalorder %v677, %v1028
        %vm1062 = vcmp.eq.s32.totalorder %v677, %v1032
        %vm1063 = vcmp.eq.s32.totalorder %v678, %v1028
        %vm1064 = vcmp.eq.s32.totalorder %v678, %v1032
        %vm1065 = vcmp.eq.s32.totalorder %v679, %v1028
        %vm1066 = vcmp.eq.s32.totalorder %v679, %v1032
        %vm1067 = vcmp.eq.s32.totalorder %v680, %v1028
        %vm1068 = vcmp.eq.s32.totalorder %v680, %v1032
        %vm1069 = vcmp.eq.s32.totalorder %v681, %v1028
        %vm1070 = vcmp.eq.s32.totalorder %v681, %v1032
        %vm1071 = vcmp.eq.s32.totalorder %v682, %v1028
        %vm1072 = vcmp.eq.s32.totalorder %v682, %v1032
        %vm1073 = vcmp.eq.s32.totalorder %v683, %v1028
        %vm1074 = vcmp.eq.s32.totalorder %v683, %v1032
        %vm1075 = vcmp.eq.s32.totalorder %v684, %v1028
        %vm1076 = vcmp.eq.s32.totalorder %v684, %v1032
        %vm1077 = vcmp.eq.s32.totalorder %v685, %v1028
        %vm1078 = vcmp.eq.s32.totalorder %v685, %v1032
        %vm1079 = vcmp.eq.s32.totalorder %v686, %v1028
        %vm1080 = vcmp.eq.s32.totalorder %v686, %v1032
        %vm1081 = vcmp.eq.s32.totalorder %v687, %v1028
        %vm1082 = vcmp.eq.s32.totalorder %v687, %v1032
        %vm1083 = vcmp.eq.s32.totalorder %v688, %v1028
        %vm1084 = vcmp.eq.s32.totalorder %v688, %v1032
        %vm1085 = vcmp.eq.s32.totalorder %v689, %v1028
        %vm1086 = vcmp.eq.s32.totalorder %v689, %v1032
        %vm1087 = vcmp.eq.s32.totalorder %v690, %v1028
        %vm1088 = vcmp.eq.s32.totalorder %v690, %v1032
        %vm1089 = vcmp.eq.s32.totalorder %v691, %v1028
        %vm1090 = vcmp.eq.s32.totalorder %v691, %v1032
        %vm1091 = vcmp.eq.s32.totalorder %v692, %v1028
        %vm1092 = vcmp.eq.s32.totalorder %v692, %v1032
        %vm1093 = vcmp.eq.s32.totalorder %v693, %v1028
        %vm1094 = vcmp.eq.s32.totalorder %v693, %v1032
        %vm1095 = vcmp.eq.s32.totalorder %v694, %v1028
        %vm1096 = vcmp.eq.s32.totalorder %v694, %v1032
        %vm1097 = vcmp.eq.s32.totalorder %v695, %v1028
        %vm1098 = vcmp.eq.s32.totalorder %v695, %v1032
        %vm1099 = vcmp.eq.s32.totalorder %v696, %v1028
        %vm1100 = vcmp.eq.s32.totalorder %v696, %v1032
        %vm1101 = vcmp.eq.s32.totalorder %v697, %v1028
        %vm1102 = vcmp.eq.s32.totalorder %v697, %v1032
        %vm1103 = vcmp.eq.s32.totalorder %v698, %v1028
        %vm1104 = vcmp.eq.s32.totalorder %v698, %v1032
        %vm1105 = vcmp.eq.s32.totalorder %v699, %v1028
        %vm1106 = vcmp.eq.s32.totalorder %v699, %v1032
        %vm1107 = vcmp.eq.s32.totalorder %v700, %v1028
        %vm1108 = vcmp.eq.s32.totalorder %v700, %v1032
        %vm1109 = vcmp.eq.s32.totalorder %v701, %v1028
        %vm1110 = vcmp.eq.s32.totalorder %v701, %v1032
        %vm1111 = vcmp.eq.s32.totalorder %v702, %v1028
        %vm1112 = vcmp.eq.s32.totalorder %v702, %v1032
        %vm1113 = vcmp.eq.s32.totalorder %v703, %v1028
        %vm1114 = vcmp.eq.s32.totalorder %v703, %v1032
        %vm1115 = vcmp.eq.s32.totalorder %v704, %v1028
        %vm1116 = vcmp.eq.s32.totalorder %v704, %v1032
        %vm1117 = vcmp.eq.s32.totalorder %v705, %v1028
        %vm1118 = vcmp.eq.s32.totalorder %v705, %v1032
        %vm1119 = vcmp.eq.s32.totalorder %v706, %v1028
        %vm1120 = vcmp.eq.s32.totalorder %v706, %v1032
        %vm1121 = vcmp.eq.s32.totalorder %v707, %v1028
        %vm1122 = vcmp.eq.s32.totalorder %v707, %v1032
        %vm1123 = vcmp.eq.s32.totalorder %v708, %v1028
        %vm1124 = vcmp.eq.s32.totalorder %v708, %v1032
        %vm1125 = vcmp.eq.s32.totalorder %v709, %v1028
        %vm1126 = vcmp.eq.s32.totalorder %v709, %v1032
        %vm1127 = vcmp.eq.s32.totalorder %v710, %v1028
        %vm1128 = vcmp.eq.s32.totalorder %v710, %v1032
        %vm1129 = vcmp.eq.s32.totalorder %v711, %v1028
        %vm1130 = vcmp.eq.s32.totalorder %v711, %v1032
        %vm1131 = vcmp.eq.s32.totalorder %v712, %v1028
        %vm1132 = vcmp.eq.s32.totalorder %v712, %v1032
        %vm1133 = vcmp.eq.s32.totalorder %v713, %v1028
        %vm1134 = vcmp.eq.s32.totalorder %v713, %v1032
        %vm1135 = vcmp.eq.s32.totalorder %v714, %v1028
        %vm1136 = vcmp.eq.s32.totalorder %v714, %v1032
        %vm1137 = vcmp.eq.s32.totalorder %v715, %v1028
        %vm1138 = vcmp.eq.s32.totalorder %v715, %v1032
        %vm1139 = vcmp.eq.s32.totalorder %v716, %v1028
        %vm1140 = vcmp.eq.s32.totalorder %v716, %v1032
        %vm1141 = vcmp.eq.s32.totalorder %v717, %v1028
        %vm1142 = vcmp.eq.s32.totalorder %v717, %v1032
        %vm1143 = vcmp.eq.s32.totalorder %v718, %v1028
        %vm1144 = vcmp.eq.s32.totalorder %v718, %v1032
        %vm1145 = vcmp.eq.s32.totalorder %v719, %v1028
        %vm1146 = vcmp.eq.s32.totalorder %v719, %v1032
        %vm1147 = vcmp.eq.s32.totalorder %v720, %v1028
        %vm1148 = vcmp.eq.s32.totalorder %v720, %v1032
        %vm1149 = vcmp.eq.s32.totalorder %v721, %v1028
        %vm1150 = vcmp.eq.s32.totalorder %v721, %v1032
        %vm1151 = vcmp.eq.s32.totalorder %v722, %v1028
        %vm1152 = vcmp.eq.s32.totalorder %v722, %v1032
        %vm1153 = vcmp.eq.s32.totalorder %v723, %v1028
        %vm1154 = vcmp.eq.s32.totalorder %v723, %v1032
        %vm1155 = vcmp.eq.s32.totalorder %v724, %v1028
        %vm1156 = vcmp.eq.s32.totalorder %v724, %v1032
        %vm1157 = vcmp.eq.s32.totalorder %v725, %v1028
        %vm1158 = vcmp.eq.s32.totalorder %v725, %v1032
        %vm1159 = vcmp.eq.s32.totalorder %v726, %v1028
        %vm1160 = vcmp.eq.s32.totalorder %v726, %v1032
        %v1161 = vadd.s32 %v661, 33
        %v1162 = vlaneseq
        %v1163 = vshrl.u32 %v1162, 7
        %v1164 = vsub.s32 0, %v1163
        %v1165 = vrot.slane %v1161, %v1164
        %v1166 = vlaneseq
        %v1167 = vshrl.u32 %v1166, 7
        %v1168 = vsub.s32 4, %v1167
        %v1169 = vrot.slane %v1161, %v1168
        %v1170 = vlaneseq
        %v1171 = vshrl.u32 %v1170, 7
        %v1172 = vsub.s32 0, %v1171
        %v1173 = vrot.slane %v1165, %v1172
        %v1174 = vlaneseq
        %v1175 = vshrl.u32 %v1174, 7
        %v1176 = vsub.s32 0, %v1175
        %v1177 = vrot.slane %v1169, %v1176
        %vm1178 = vcmp.eq.s32.totalorder %v663, %v1173
        %vm1179 = vcmp.eq.s32.totalorder %v663, %v1177
        %vm1180 = vcmp.eq.s32.totalorder %v664, %v1173
        %vm1181 = vcmp.eq.s32.totalorder %v664, %v1177
        %vm1182 = vcmp.eq.s32.totalorder %v665, %v1173
        %vm1183 = vcmp.eq.s32.totalorder %v665, %v1177
        %vm1184 = vcmp.eq.s32.totalorder %v666, %v1173
        %vm1185 = vcmp.eq.s32.totalorder %v666, %v1177
        %vm1186 = vcmp.eq.s32.totalorder %v667, %v1173
        %vm1187 = vcmp.eq.s32.totalorder %v667, %v1177
        %vm1188 = vcmp.eq.s32.totalorder %v668, %v1173
        %vm1189 = vcmp.eq.s32.totalorder %v668, %v1177
        %vm1190 = vcmp.eq.s32.totalorder %v669, %v1173
        %vm1191 = vcmp.eq.s32.totalorder %v669, %v1177
        %vm1192 = vcmp.eq.s32.totalorder %v670, %v1173
        %vm1193 = vcmp.eq.s32.totalorder %v670, %v1177
        %vm1194 = vcmp.eq.s32.totalorder %v671, %v1173
        %vm1195 = vcmp.eq.s32.totalorder %v671, %v1177
        %vm1196 = vcmp.eq.s32.totalorder %v672, %v1173
        %vm1197 = vcmp.eq.s32.totalorder %v672, %v1177
        %vm1198 = vcmp.eq.s32.totalorder %v673, %v1173
        %vm1199 = vcmp.eq.s32.totalorder %v673, %v1177
        %vm1200 = vcmp.eq.s32.totalorder %v674, %v1173
        %vm1201 = vcmp.eq.s32.totalorder %v674, %v1177
        %vm1202 = vcmp.eq.s32.totalorder %v675, %v1173
        %vm1203 = vcmp.eq.s32.totalorder %v675, %v1177
        %vm1204 = vcmp.eq.s32.totalorder %v676, %v1173
        %vm1205 = vcmp.eq.s32.totalorder %v676, %v1177
        %vm1206 = vcmp.eq.s32.totalorder %v677, %v1173
        %vm1207 = vcmp.eq.s32.totalorder %v677, %v1177
        %vm1208 = vcmp.eq.s32.totalorder %v678, %v1173
        %vm1209 = vcmp.eq.s32.totalorder %v678, %v1177
        %vm1210 = vcmp.eq.s32.totalorder %v679, %v1173
        %vm1211 = vcmp.eq.s32.totalorder %v679, %v1177
        %vm1212 = vcmp.eq.s32.totalorder %v680, %v1173
        %vm1213 = vcmp.eq.s32.totalorder %v680, %v1177
        %vm1214 = vcmp.eq.s32.totalorder %v681, %v1173
        %vm1215 = vcmp.eq.s32.totalorder %v681, %v1177
        %vm1216 = vcmp.eq.s32.totalorder %v682, %v1173
        %vm1217 = vcmp.eq.s32.totalorder %v682, %v1177
        %vm1218 = vcmp.eq.s32.totalorder %v683, %v1173
        %vm1219 = vcmp.eq.s32.totalorder %v683, %v1177
        %vm1220 = vcmp.eq.s32.totalorder %v684, %v1173
        %vm1221 = vcmp.eq.s32.totalorder %v684, %v1177
        %vm1222 = vcmp.eq.s32.totalorder %v685, %v1173
        %vm1223 = vcmp.eq.s32.totalorder %v685, %v1177
        %vm1224 = vcmp.eq.s32.totalorder %v686, %v1173
        %vm1225 = vcmp.eq.s32.totalorder %v686, %v1177
        %vm1226 = vcmp.eq.s32.totalorder %v687, %v1173
        %vm1227 = vcmp.eq.s32.totalorder %v687, %v1177
        %vm1228 = vcmp.eq.s32.totalorder %v688, %v1173
        %vm1229 = vcmp.eq.s32.totalorder %v688, %v1177
        %vm1230 = vcmp.eq.s32.totalorder %v689, %v1173
        %vm1231 = vcmp.eq.s32.totalorder %v689, %v1177
        %vm1232 = vcmp.eq.s32.totalorder %v690, %v1173
        %vm1233 = vcmp.eq.s32.totalorder %v690, %v1177
        %vm1234 = vcmp.eq.s32.totalorder %v691, %v1173
        %vm1235 = vcmp.eq.s32.totalorder %v691, %v1177
        %vm1236 = vcmp.eq.s32.totalorder %v692, %v1173
        %vm1237 = vcmp.eq.s32.totalorder %v692, %v1177
        %vm1238 = vcmp.eq.s32.totalorder %v693, %v1173
        %vm1239 = vcmp.eq.s32.totalorder %v693, %v1177
        %vm1240 = vcmp.eq.s32.totalorder %v694, %v1173
        %vm1241 = vcmp.eq.s32.totalorder %v694, %v1177
        %vm1242 = vcmp.eq.s32.totalorder %v695, %v1173
        %vm1243 = vcmp.eq.s32.totalorder %v695, %v1177
        %vm1244 = vcmp.eq.s32.totalorder %v696, %v1173
        %vm1245 = vcmp.eq.s32.totalorder %v696, %v1177
        %vm1246 = vcmp.eq.s32.totalorder %v697, %v1173
        %vm1247 = vcmp.eq.s32.totalorder %v697, %v1177
        %vm1248 = vcmp.eq.s32.totalorder %v698, %v1173
        %vm1249 = vcmp.eq.s32.totalorder %v698, %v1177
        %vm1250 = vcmp.eq.s32.totalorder %v699, %v1173
        %vm1251 = vcmp.eq.s32.totalorder %v699, %v1177
        %vm1252 = vcmp.eq.s32.totalorder %v700, %v1173
        %vm1253 = vcmp.eq.s32.totalorder %v700, %v1177
        %vm1254 = vcmp.eq.s32.totalorder %v701, %v1173
        %vm1255 = vcmp.eq.s32.totalorder %v701, %v1177
        %vm1256 = vcmp.eq.s32.totalorder %v702, %v1173
        %vm1257 = vcmp.eq.s32.totalorder %v702, %v1177
        %vm1258 = vcmp.eq.s32.totalorder %v703, %v1173
        %vm1259 = vcmp.eq.s32.totalorder %v703, %v1177
        %vm1260 = vcmp.eq.s32.totalorder %v704, %v1173
        %vm1261 = vcmp.eq.s32.totalorder %v704, %v1177
        %vm1262 = vcmp.eq.s32.totalorder %v705, %v1173
        %vm1263 = vcmp.eq.s32.totalorder %v705, %v1177
        %vm1264 = vcmp.eq.s32.totalorder %v706, %v1173
        %vm1265 = vcmp.eq.s32.totalorder %v706, %v1177
        %vm1266 = vcmp.eq.s32.totalorder %v707, %v1173
        %vm1267 = vcmp.eq.s32.totalorder %v707, %v1177
        %vm1268 = vcmp.eq.s32.totalorder %v708, %v1173
        %vm1269 = vcmp.eq.s32.totalorder %v708, %v1177
        %vm1270 = vcmp.eq.s32.totalorder %v709, %v1173
        %vm1271 = vcmp.eq.s32.totalorder %v709, %v1177
        %vm1272 = vcmp.eq.s32.totalorder %v710, %v1173
        %vm1273 = vcmp.eq.s32.totalorder %v710, %v1177
        %vm1274 = vcmp.eq.s32.totalorder %v711, %v1173
        %vm1275 = vcmp.eq.s32.totalorder %v711, %v1177
        %vm1276 = vcmp.eq.s32.totalorder %v712, %v1173
        %vm1277 = vcmp.eq.s32.totalorder %v712, %v1177
        %vm1278 = vcmp.eq.s32.totalorder %v713, %v1173
        %vm1279 = vcmp.eq.s32.totalorder %v713, %v1177
        %vm1280 = vcmp.eq.s32.totalorder %v714, %v1173
        %vm1281 = vcmp.eq.s32.totalorder %v714, %v1177
        %vm1282 = vcmp.eq.s32.totalorder %v715, %v1173
        %vm1283 = vcmp.eq.s32.totalorder %v715, %v1177
        %vm1284 = vcmp.eq.s32.totalorder %v716, %v1173
        %vm1285 = vcmp.eq.s32.totalorder %v716, %v1177
        %vm1286 = vcmp.eq.s32.totalorder %v717, %v1173
        %vm1287 = vcmp.eq.s32.totalorder %v717, %v1177
        %vm1288 = vcmp.eq.s32.totalorder %v718, %v1173
        %vm1289 = vcmp.eq.s32.totalorder %v718, %v1177
        %vm1290 = vcmp.eq.s32.totalorder %v719, %v1173
        %vm1291 = vcmp.eq.s32.totalorder %v719, %v1177
        %vm1292 = vcmp.eq.s32.totalorder %v720, %v1173
        %vm1293 = vcmp.eq.s32.totalorder %v720, %v1177
        %vm1294 = vcmp.eq.s32.totalorder %v721, %v1173
        %vm1295 = vcmp.eq.s32.totalorder %v721, %v1177
        %vm1296 = vcmp.eq.s32.totalorder %v722, %v1173
        %vm1297 = vcmp.eq.s32.totalorder %v722, %v1177
        %vm1298 = vcmp.eq.s32.totalorder %v723, %v1173
        %vm1299 = vcmp.eq.s32.totalorder %v723, %v1177
        %vm1300 = vcmp.eq.s32.totalorder %v724, %v1173
        %vm1301 = vcmp.eq.s32.totalorder %v724, %v1177
        %vm1302 = vcmp.eq.s32.totalorder %v725, %v1173
        %vm1303 = vcmp.eq.s32.totalorder %v725, %v1177
        %vm1304 = vcmp.eq.s32.totalorder %v726, %v1173
        %vm1305 = vcmp.eq.s32.totalorder %v726, %v1177
        %v1307 = vlaneseq
        %v1308 = vshrl.u32 %v1307, 7
        %v1309 = vsub.s32 0, %v1308
        %v1310 = vrot.slane %v659, %v1309
        %v1311 = vlaneseq
        %v1312 = vshrl.u32 %v1311, 7
        %v1313 = vsub.s32 4, %v1312
        %v1314 = vrot.slane %v659, %v1313
        %v1317 = vlaneseq
        %v1318 = vshrl.u32 %v1317, 7
        %v1319 = vsub.s32 0, %v1318
        %v1320 = vrot.slane %v1310, %v1319
        %v1321 = vlaneseq
        %v1322 = vshrl.u32 %v1321, 7
        %v1323 = vsub.s32 0, %v1322
        %v1324 = vrot.slane %v1314, %v1323
        %v1325 = vsel %vm1178, %v1320, 0.0
        %v1326 = vsel %vm1179, %v1324, 0.0
        %v1327 = vsel %vm1180, %v1320, 0.0
        %v1328 = vsel %vm1181, %v1324, 0.0
        %v1329 = vsel %vm1182, %v1320, 0.0
        %v1330 = vsel %vm1183, %v1324, 0.0
        %v1331 = vsel %vm1184, %v1320, 0.0
        %v1332 = vsel %vm1185, %v1324, 0.0
        %v1333 = vsel %vm1186, %v1320, 0.0
        %v1334 = vsel %vm1187, %v1324, 0.0
        %v1335 = vsel %vm1188, %v1320, 0.0
        %v1336 = vsel %vm1189, %v1324, 0.0
        %v1337 = vsel %vm1190, %v1320, 0.0
        %v1338 = vsel %vm1191, %v1324, 0.0
        %v1339 = vsel %vm1192, %v1320, 0.0
        %v1340 = vsel %vm1193, %v1324, 0.0
        %v1341 = vsel %vm1194, %v1320, 0.0
        %v1342 = vsel %vm1195, %v1324, 0.0
        %v1343 = vsel %vm1196, %v1320, 0.0
        %v1344 = vsel %vm1197, %v1324, 0.0
        %v1345 = vsel %vm1198, %v1320, 0.0
        %v1346 = vsel %vm1199, %v1324, 0.0
        %v1347 = vsel %vm1200, %v1320, 0.0
        %v1348 = vsel %vm1201, %v1324, 0.0
        %v1349 = vsel %vm1202, %v1320, 0.0
        %v1350 = vsel %vm1203, %v1324, 0.0
        %v1351 = vsel %vm1204, %v1320, 0.0
        %v1352 = vsel %vm1205, %v1324, 0.0
        %v1353 = vsel %vm1206, %v1320, 0.0
        %v1354 = vsel %vm1207, %v1324, 0.0
        %v1355 = vsel %vm1208, %v1320, 0.0
        %v1356 = vsel %vm1209, %v1324, 0.0
        %v1357 = vsel %vm1210, %v1320, 0.0
        %v1358 = vsel %vm1211, %v1324, 0.0
        %v1359 = vsel %vm1212, %v1320, 0.0
        %v1360 = vsel %vm1213, %v1324, 0.0
        %v1361 = vsel %vm1214, %v1320, 0.0
        %v1362 = vsel %vm1215, %v1324, 0.0
        %v1363 = vsel %vm1216, %v1320, 0.0
        %v1364 = vsel %vm1217, %v1324, 0.0
        %v1365 = vsel %vm1218, %v1320, 0.0
        %v1366 = vsel %vm1219, %v1324, 0.0
        %v1367 = vsel %vm1220, %v1320, 0.0
        %v1368 = vsel %vm1221, %v1324, 0.0
        %v1369 = vsel %vm1222, %v1320, 0.0
        %v1370 = vsel %vm1223, %v1324, 0.0
        %v1371 = vsel %vm1224, %v1320, 0.0
        %v1372 = vsel %vm1225, %v1324, 0.0
        %v1373 = vsel %vm1226, %v1320, 0.0
        %v1374 = vsel %vm1227, %v1324, 0.0
        %v1375 = vsel %vm1228, %v1320, 0.0
        %v1376 = vsel %vm1229, %v1324, 0.0
        %v1377 = vsel %vm1230, %v1320, 0.0
        %v1378 = vsel %vm1231, %v1324, 0.0
        %v1379 = vsel %vm1232, %v1320, 0.0
        %v1380 = vsel %vm1233, %v1324, 0.0
        %v1381 = vsel %vm1234, %v1320, 0.0
        %v1382 = vsel %vm1235, %v1324, 0.0
        %v1383 = vsel %vm1236, %v1320, 0.0
        %v1384 = vsel %vm1237, %v1324, 0.0
        %v1385 = vsel %vm1238, %v1320, 0.0
        %v1386 = vsel %vm1239, %v1324, 0.0
        %v1387 = vsel %vm1240, %v1320, 0.0
        %v1388 = vsel %vm1241, %v1324, 0.0
        %v1389 = vsel %vm1242, %v1320, 0.0
        %v1390 = vsel %vm1243, %v1324, 0.0
        %v1391 = vsel %vm1244, %v1320, 0.0
        %v1392 = vsel %vm1245, %v1324, 0.0
        %v1393 = vsel %vm1246, %v1320, 0.0
        %v1394 = vsel %vm1247, %v1324, 0.0
        %v1395 = vsel %vm1248, %v1320, 0.0
        %v1396 = vsel %vm1249, %v1324, 0.0
        %v1397 = vsel %vm1250, %v1320, 0.0
        %v1398 = vsel %vm1251, %v1324, 0.0
        %v1399 = vsel %vm1252, %v1320, 0.0
        %v1400 = vsel %vm1253, %v1324, 0.0
        %v1401 = vsel %vm1254, %v1320, 0.0
        %v1402 = vsel %vm1255, %v1324, 0.0
        %v1403 = vsel %vm1256, %v1320, 0.0
        %v1404 = vsel %vm1257, %v1324, 0.0
        %v1405 = vsel %vm1258, %v1320, 0.0
        %v1406 = vsel %vm1259, %v1324, 0.0
        %v1407 = vsel %vm1260, %v1320, 0.0
        %v1408 = vsel %vm1261, %v1324, 0.0
        %v1409 = vsel %vm1262, %v1320, 0.0
        %v1410 = vsel %vm1263, %v1324, 0.0
        %v1411 = vsel %vm1264, %v1320, 0.0
        %v1412 = vsel %vm1265, %v1324, 0.0
        %v1413 = vsel %vm1266, %v1320, 0.0
        %v1414 = vsel %vm1267, %v1324, 0.0
        %v1415 = vsel %vm1268, %v1320, 0.0
        %v1416 = vsel %vm1269, %v1324, 0.0
        %v1417 = vsel %vm1270, %v1320, 0.0
        %v1418 = vsel %vm1271, %v1324, 0.0
        %v1419 = vsel %vm1272, %v1320, 0.0
        %v1420 = vsel %vm1273, %v1324, 0.0
        %v1421 = vsel %vm1274, %v1320, 0.0
        %v1422 = vsel %vm1275, %v1324, 0.0
        %v1423 = vsel %vm1276, %v1320, 0.0
        %v1424 = vsel %vm1277, %v1324, 0.0
        %v1425 = vsel %vm1278, %v1320, 0.0
        %v1426 = vsel %vm1279, %v1324, 0.0
        %v1427 = vsel %vm1280, %v1320, 0.0
        %v1428 = vsel %vm1281, %v1324, 0.0
        %v1429 = vsel %vm1282, %v1320, 0.0
        %v1430 = vsel %vm1283, %v1324, 0.0
        %v1431 = vsel %vm1284, %v1320, 0.0
        %v1432 = vsel %vm1285, %v1324, 0.0
        %v1433 = vsel %vm1286, %v1320, 0.0
        %v1434 = vsel %vm1287, %v1324, 0.0
        %v1435 = vsel %vm1288, %v1320, 0.0
        %v1436 = vsel %vm1289, %v1324, 0.0
        %v1437 = vsel %vm1290, %v1320, 0.0
        %v1438 = vsel %vm1291, %v1324, 0.0
        %v1439 = vsel %vm1292, %v1320, 0.0
        %v1440 = vsel %vm1293, %v1324, 0.0
        %v1441 = vsel %vm1294, %v1320, 0.0
        %v1442 = vsel %vm1295, %v1324, 0.0
        %v1443 = vsel %vm1296, %v1320, 0.0
        %v1444 = vsel %vm1297, %v1324, 0.0
        %v1445 = vsel %vm1298, %v1320, 0.0
        %v1446 = vsel %vm1299, %v1324, 0.0
        %v1447 = vsel %vm1300, %v1320, 0.0
        %v1448 = vsel %vm1301, %v1324, 0.0
        %v1449 = vsel %vm1302, %v1320, 0.0
        %v1450 = vsel %vm1303, %v1324, 0.0
        %v1451 = vsel %vm1304, %v1320, 0.0
        %v1452 = vsel %vm1305, %v1324, 0.0
        %v1454 = vlaneseq
        %v1455 = vshrl.u32 %v1454, 7
        %v1456 = vsub.s32 0, %v1455
        %v1457 = vrot.slane %v656, %v1456
        %v1458 = vlaneseq
        %v1459 = vshrl.u32 %v1458, 7
        %v1460 = vsub.s32 4, %v1459
        %v1461 = vrot.slane %v656, %v1460
        %v1464 = vlaneseq
        %v1465 = vshrl.u32 %v1464, 7
        %v1466 = vsub.s32 0, %v1465
        %v1467 = vrot.slane %v1457, %v1466
        %v1468 = vlaneseq
        %v1469 = vshrl.u32 %v1468, 7
        %v1470 = vsub.s32 0, %v1469
        %v1471 = vrot.slane %v1461, %v1470
        %v1472 = vsel %vm1033, %v1467, %v1325
        %v1473 = vsel %vm1034, %v1471, %v1326
        %v1474 = vsel %vm1035, %v1467, %v1327
        %v1475 = vsel %vm1036, %v1471, %v1328
        %v1476 = vsel %vm1037, %v1467, %v1329
        %v1477 = vsel %vm1038, %v1471, %v1330
        %v1478 = vsel %vm1039, %v1467, %v1331
        %v1479 = vsel %vm1040, %v1471, %v1332
        %v1480 = vsel %vm1041, %v1467, %v1333
        %v1481 = vsel %vm1042, %v1471, %v1334
        %v1482 = vsel %vm1043, %v1467, %v1335
        %v1483 = vsel %vm1044, %v1471, %v1336
        %v1484 = vsel %vm1045, %v1467, %v1337
        %v1485 = vsel %vm1046, %v1471, %v1338
        %v1486 = vsel %vm1047, %v1467, %v1339
        %v1487 = vsel %vm1048, %v1471, %v1340
        %v1488 = vsel %vm1049, %v1467, %v1341
        %v1489 = vsel %vm1050, %v1471, %v1342
        %v1490 = vsel %vm1051, %v1467, %v1343
        %v1491 = vsel %vm1052, %v1471, %v1344
        %v1492 = vsel %vm1053, %v1467, %v1345
        %v1493 = vsel %vm1054, %v1471, %v1346
        %v1494 = vsel %vm1055, %v1467, %v1347
        %v1495 = vsel %vm1056, %v1471, %v1348
        %v1496 = vsel %vm1057, %v1467, %v1349
        %v1497 = vsel %vm1058, %v1471, %v1350
        %v1498 = vsel %vm1059, %v1467, %v1351
        %v1499 = vsel %vm1060, %v1471, %v1352
        %v1500 = vsel %vm1061, %v1467, %v1353
        %v1501 = vsel %vm1062, %v1471, %v1354
        %v1502 = vsel %vm1063, %v1467, %v1355
        %v1503 = vsel %vm1064, %v1471, %v1356
        %v1504 = vsel %vm1065, %v1467, %v1357
        %v1505 = vsel %vm1066, %v1471, %v1358
        %v1506 = vsel %vm1067, %v1467, %v1359
        %v1507 = vsel %vm1068, %v1471, %v1360
        %v1508 = vsel %vm1069, %v1467, %v1361
        %v1509 = vsel %vm1070, %v1471, %v1362
        %v1510 = vsel %vm1071, %v1467, %v1363
        %v1511 = vsel %vm1072, %v1471, %v1364
        %v1512 = vsel %vm1073, %v1467, %v1365
        %v1513 = vsel %vm1074, %v1471, %v1366
        %v1514 = vsel %vm1075, %v1467, %v1367
        %v1515 = vsel %vm1076, %v1471, %v1368
        %v1516 = vsel %vm1077, %v1467, %v1369
        %v1517 = vsel %vm1078, %v1471, %v1370
        %v1518 = vsel %vm1079, %v1467, %v1371
        %v1519 = vsel %vm1080, %v1471, %v1372
        %v1520 = vsel %vm1081, %v1467, %v1373
        %v1521 = vsel %vm1082, %v1471, %v1374
        %v1522 = vsel %vm1083, %v1467, %v1375
        %v1523 = vsel %vm1084, %v1471, %v1376
        %v1524 = vsel %vm1085, %v1467, %v1377
        %v1525 = vsel %vm1086, %v1471, %v1378
        %v1526 = vsel %vm1087, %v1467, %v1379
        %v1527 = vsel %vm1088, %v1471, %v1380
        %v1528 = vsel %vm1089, %v1467, %v1381
        %v1529 = vsel %vm1090, %v1471, %v1382
        %v1530 = vsel %vm1091, %v1467, %v1383
        %v1531 = vsel %vm1092, %v1471, %v1384
        %v1532 = vsel %vm1093, %v1467, %v1385
        %v1533 = vsel %vm1094, %v1471, %v1386
        %v1534 = vsel %vm1095, %v1467, %v1387
        %v1535 = vsel %vm1096, %v1471, %v1388
        %v1536 = vsel %vm1097, %v1467, %v1389
        %v1537 = vsel %vm1098, %v1471, %v1390
        %v1538 = vsel %vm1099, %v1467, %v1391
        %v1539 = vsel %vm1100, %v1471, %v1392
        %v1540 = vsel %vm1101, %v1467, %v1393
        %v1541 = vsel %vm1102, %v1471, %v1394
        %v1542 = vsel %vm1103, %v1467, %v1395
        %v1543 = vsel %vm1104, %v1471, %v1396
        %v1544 = vsel %vm1105, %v1467, %v1397
        %v1545 = vsel %vm1106, %v1471, %v1398
        %v1546 = vsel %vm1107, %v1467, %v1399
        %v1547 = vsel %vm1108, %v1471, %v1400
        %v1548 = vsel %vm1109, %v1467, %v1401
        %v1549 = vsel %vm1110, %v1471, %v1402
        %v1550 = vsel %vm1111, %v1467, %v1403
        %v1551 = vsel %vm1112, %v1471, %v1404
        %v1552 = vsel %vm1113, %v1467, %v1405
        %v1553 = vsel %vm1114, %v1471, %v1406
        %v1554 = vsel %vm1115, %v1467, %v1407
        %v1555 = vsel %vm1116, %v1471, %v1408
        %v1556 = vsel %vm1117, %v1467, %v1409
        %v1557 = vsel %vm1118, %v1471, %v1410
        %v1558 = vsel %vm1119, %v1467, %v1411
        %v1559 = vsel %vm1120, %v1471, %v1412
        %v1560 = vsel %vm1121, %v1467, %v1413
        %v1561 = vsel %vm1122, %v1471, %v1414
        %v1562 = vsel %vm1123, %v1467, %v1415
        %v1563 = vsel %vm1124, %v1471, %v1416
        %v1564 = vsel %vm1125, %v1467, %v1417
        %v1565 = vsel %vm1126, %v1471, %v1418
        %v1566 = vsel %vm1127, %v1467, %v1419
        %v1567 = vsel %vm1128, %v1471, %v1420
        %v1568 = vsel %vm1129, %v1467, %v1421
        %v1569 = vsel %vm1130, %v1471, %v1422
        %v1570 = vsel %vm1131, %v1467, %v1423
        %v1571 = vsel %vm1132, %v1471, %v1424
        %v1572 = vsel %vm1133, %v1467, %v1425
        %v1573 = vsel %vm1134, %v1471, %v1426
        %v1574 = vsel %vm1135, %v1467, %v1427
        %v1575 = vsel %vm1136, %v1471, %v1428
        %v1576 = vsel %vm1137, %v1467, %v1429
        %v1577 = vsel %vm1138, %v1471, %v1430
        %v1578 = vsel %vm1139, %v1467, %v1431
        %v1579 = vsel %vm1140, %v1471, %v1432
        %v1580 = vsel %vm1141, %v1467, %v1433
        %v1581 = vsel %vm1142, %v1471, %v1434
        %v1582 = vsel %vm1143, %v1467, %v1435
        %v1583 = vsel %vm1144, %v1471, %v1436
        %v1584 = vsel %vm1145, %v1467, %v1437
        %v1585 = vsel %vm1146, %v1471, %v1438
        %v1586 = vsel %vm1147, %v1467, %v1439
        %v1587 = vsel %vm1148, %v1471, %v1440
        %v1588 = vsel %vm1149, %v1467, %v1441
        %v1589 = vsel %vm1150, %v1471, %v1442
        %v1590 = vsel %vm1151, %v1467, %v1443
        %v1591 = vsel %vm1152, %v1471, %v1444
        %v1592 = vsel %vm1153, %v1467, %v1445
        %v1593 = vsel %vm1154, %v1471, %v1446
        %v1594 = vsel %vm1155, %v1467, %v1447
        %v1595 = vsel %vm1156, %v1471, %v1448
        %v1596 = vsel %vm1157, %v1467, %v1449
        %v1597 = vsel %vm1158, %v1471, %v1450
        %v1598 = vsel %vm1159, %v1467, %v1451
        %v1599 = vsel %vm1160, %v1471, %v1452
        %v1601 = vlaneseq
        %v1602 = vshrl.u32 %v1601, 7
        %v1603 = vsub.s32 0, %v1602
        %v1604 = vrot.slane %v653, %v1603
        %v1605 = vlaneseq
        %v1606 = vshrl.u32 %v1605, 7
        %v1607 = vsub.s32 4, %v1606
        %v1608 = vrot.slane %v653, %v1607
        %v1611 = vlaneseq
        %v1612 = vshrl.u32 %v1611, 7
        %v1613 = vsub.s32 0, %v1612
        %v1614 = vrot.slane %v1604, %v1613
        %v1615 = vlaneseq
        %v1616 = vshrl.u32 %v1615, 7
        %v1617 = vsub.s32 0, %v1616
        %v1618 = vrot.slane %v1608, %v1617
        %v1619 = vsel %vm888, %v1614, %v1472
        %v1620 = vsel %vm889, %v1618, %v1473
        %v1621 = vsel %vm890, %v1614, %v1474
        %v1622 = vsel %vm891, %v1618, %v1475
        %v1623 = vsel %vm892, %v1614, %v1476
        %v1624 = vsel %vm893, %v1618, %v1477
        %v1625 = vsel %vm894, %v1614, %v1478
        %v1626 = vsel %vm895, %v1618, %v1479
        %v1627 = vsel %vm896, %v1614, %v1480
        %v1628 = vsel %vm897, %v1618, %v1481
        %v1629 = vsel %vm898, %v1614, %v1482
        %v1630 = vsel %vm899, %v1618, %v1483
        %v1631 = vsel %vm900, %v1614, %v1484
        %v1632 = vsel %vm901, %v1618, %v1485
        %v1633 = vsel %vm902, %v1614, %v1486
        %v1634 = vsel %vm903, %v1618, %v1487
        %v1635 = vsel %vm904, %v1614, %v1488
        %v1636 = vsel %vm905, %v1618, %v1489
        %v1637 = vsel %vm906, %v1614, %v1490
        %v1638 = vsel %vm907, %v1618, %v1491
        %v1639 = vsel %vm908, %v1614, %v1492
        %v1640 = vsel %vm909, %v1618, %v1493
        %v1641 = vsel %vm910, %v1614, %v1494
        %v1642 = vsel %vm911, %v1618, %v1495
        %v1643 = vsel %vm912, %v1614, %v1496
        %v1644 = vsel %vm913, %v1618, %v1497
        %v1645 = vsel %vm914, %v1614, %v1498
        %v1646 = vsel %vm915, %v1618, %v1499
        %v1647 = vsel %vm916, %v1614, %v1500
        %v1648 = vsel %vm917, %v1618, %v1501
        %v1649 = vsel %vm918, %v1614, %v1502
        %v1650 = vsel %vm919, %v1618, %v1503
        %v1651 = vsel %vm920, %v1614, %v1504
        %v1652 = vsel %vm921, %v1618, %v1505
        %v1653 = vsel %vm922, %v1614, %v1506
        %v1654 = vsel %vm923, %v1618, %v1507
        %v1655 = vsel %vm924, %v1614, %v1508
        %v1656 = vsel %vm925, %v1618, %v1509
        %v1657 = vsel %vm926, %v1614, %v1510
        %v1658 = vsel %vm927, %v1618, %v1511
        %v1659 = vsel %vm928, %v1614, %v1512
        %v1660 = vsel %vm929, %v1618, %v1513
        %v1661 = vsel %vm930, %v1614, %v1514
        %v1662 = vsel %vm931, %v1618, %v1515
        %v1663 = vsel %vm932, %v1614, %v1516
        %v1664 = vsel %vm933, %v1618, %v1517
        %v1665 = vsel %vm934, %v1614, %v1518
        %v1666 = vsel %vm935, %v1618, %v1519
        %v1667 = vsel %vm936, %v1614, %v1520
        %v1668 = vsel %vm937, %v1618, %v1521
        %v1669 = vsel %vm938, %v1614, %v1522
        %v1670 = vsel %vm939, %v1618, %v1523
        %v1671 = vsel %vm940, %v1614, %v1524
        %v1672 = vsel %vm941, %v1618, %v1525
        %v1673 = vsel %vm942, %v1614, %v1526
        %v1674 = vsel %vm943, %v1618, %v1527
        %v1675 = vsel %vm944, %v1614, %v1528
        %v1676 = vsel %vm945, %v1618, %v1529
        %v1677 = vsel %vm946, %v1614, %v1530
        %v1678 = vsel %vm947, %v1618, %v1531
        %v1679 = vsel %vm948, %v1614, %v1532
        %v1680 = vsel %vm949, %v1618, %v1533
        %v1681 = vsel %vm950, %v1614, %v1534
        %v1682 = vsel %vm951, %v1618, %v1535
        %v1683 = vsel %vm952, %v1614, %v1536
        %v1684 = vsel %vm953, %v1618, %v1537
        %v1685 = vsel %vm954, %v1614, %v1538
        %v1686 = vsel %vm955, %v1618, %v1539
        %v1687 = vsel %vm956, %v1614, %v1540
        %v1688 = vsel %vm957, %v1618, %v1541
        %v1689 = vsel %vm958, %v1614, %v1542
        %v1690 = vsel %vm959, %v1618, %v1543
        %v1691 = vsel %vm960, %v1614, %v1544
        %v1692 = vsel %vm961, %v1618, %v1545
        %v1693 = vsel %vm962, %v1614, %v1546
        %v1694 = vsel %vm963, %v1618, %v1547
        %v1695 = vsel %vm964, %v1614, %v1548
        %v1696 = vsel %vm965, %v1618, %v1549
        %v1697 = vsel %vm966, %v1614, %v1550
        %v1698 = vsel %vm967, %v1618, %v1551
        %v1699 = vsel %vm968, %v1614, %v1552
        %v1700 = vsel %vm969, %v1618, %v1553
        %v1701 = vsel %vm970, %v1614, %v1554
        %v1702 = vsel %vm971, %v1618, %v1555
        %v1703 = vsel %vm972, %v1614, %v1556
        %v1704 = vsel %vm973, %v1618, %v1557
        %v1705 = vsel %vm974, %v1614, %v1558
        %v1706 = vsel %vm975, %v1618, %v1559
        %v1707 = vsel %vm976, %v1614, %v1560
        %v1708 = vsel %vm977, %v1618, %v1561
        %v1709 = vsel %vm978, %v1614, %v1562
        %v1710 = vsel %vm979, %v1618, %v1563
        %v1711 = vsel %vm980, %v1614, %v1564
        %v1712 = vsel %vm981, %v1618, %v1565
        %v1713 = vsel %vm982, %v1614, %v1566
        %v1714 = vsel %vm983, %v1618, %v1567
        %v1715 = vsel %vm984, %v1614, %v1568
        %v1716 = vsel %vm985, %v1618, %v1569
        %v1717 = vsel %vm986, %v1614, %v1570
        %v1718 = vsel %vm987, %v1618, %v1571
        %v1719 = vsel %vm988, %v1614, %v1572
        %v1720 = vsel %vm989, %v1618, %v1573
        %v1721 = vsel %vm990, %v1614, %v1574
        %v1722 = vsel %vm991, %v1618, %v1575
        %v1723 = vsel %vm992, %v1614, %v1576
        %v1724 = vsel %vm993, %v1618, %v1577
        %v1725 = vsel %vm994, %v1614, %v1578
        %v1726 = vsel %vm995, %v1618, %v1579
        %v1727 = vsel %vm996, %v1614, %v1580
        %v1728 = vsel %vm997, %v1618, %v1581
        %v1729 = vsel %vm998, %v1614, %v1582
        %v1730 = vsel %vm999, %v1618, %v1583
        %v1731 = vsel %vm1000, %v1614, %v1584
        %v1732 = vsel %vm1001, %v1618, %v1585
        %v1733 = vsel %vm1002, %v1614, %v1586
        %v1734 = vsel %vm1003, %v1618, %v1587
        %v1735 = vsel %vm1004, %v1614, %v1588
        %v1736 = vsel %vm1005, %v1618, %v1589
        %v1737 = vsel %vm1006, %v1614, %v1590
        %v1738 = vsel %vm1007, %v1618, %v1591
        %v1739 = vsel %vm1008, %v1614, %v1592
        %v1740 = vsel %vm1009, %v1618, %v1593
        %v1741 = vsel %vm1010, %v1614, %v1594
        %v1742 = vsel %vm1011, %v1618, %v1595
        %v1743 = vsel %vm1012, %v1614, %v1596
        %v1744 = vsel %vm1013, %v1618, %v1597
        %v1745 = vsel %vm1014, %v1614, %v1598
        %v1746 = vsel %vm1015, %v1618, %v1599
        %v1748 = vlaneseq
        %v1749 = vshrl.u32 %v1748, 7
        %v1750 = vsub.s32 0, %v1749
        %v1751 = vrot.slane %v650, %v1750
        %v1752 = vlaneseq
        %v1753 = vshrl.u32 %v1752, 7
        %v1754 = vsub.s32 4, %v1753
        %v1755 = vrot.slane %v650, %v1754
        %v1758 = vlaneseq
        %v1759 = vshrl.u32 %v1758, 7
        %v1760 = vsub.s32 0, %v1759
        %v1761 = vrot.slane %v1751, %v1760
        %v1762 = vlaneseq
        %v1763 = vshrl.u32 %v1762, 7
        %v1764 = vsub.s32 0, %v1763
        %v1765 = vrot.slane %v1755, %v1764
        %v1766 = vsel %vm743, %v1761, %v1619
        %v1767 = vsel %vm744, %v1765, %v1620
        %v1768 = vsel %vm745, %v1761, %v1621
        %v1769 = vsel %vm746, %v1765, %v1622
        %v1770 = vsel %vm747, %v1761, %v1623
        %v1771 = vsel %vm748, %v1765, %v1624
        %v1772 = vsel %vm749, %v1761, %v1625
        %v1773 = vsel %vm750, %v1765, %v1626
        %v1774 = vsel %vm751, %v1761, %v1627
        %v1775 = vsel %vm752, %v1765, %v1628
        %v1776 = vsel %vm753, %v1761, %v1629
        %v1777 = vsel %vm754, %v1765, %v1630
        %v1778 = vsel %vm755, %v1761, %v1631
        %v1779 = vsel %vm756, %v1765, %v1632
        %v1780 = vsel %vm757, %v1761, %v1633
        %v1781 = vsel %vm758, %v1765, %v1634
        %v1782 = vsel %vm759, %v1761, %v1635
        %v1783 = vsel %vm760, %v1765, %v1636
        %v1784 = vsel %vm761, %v1761, %v1637
        %v1785 = vsel %vm762, %v1765, %v1638
        %v1786 = vsel %vm763, %v1761, %v1639
        %v1787 = vsel %vm764, %v1765, %v1640
        %v1788 = vsel %vm765, %v1761, %v1641
        %v1789 = vsel %vm766, %v1765, %v1642
        %v1790 = vsel %vm767, %v1761, %v1643
        %v1791 = vsel %vm768, %v1765, %v1644
        %v1792 = vsel %vm769, %v1761, %v1645
        %v1793 = vsel %vm770, %v1765, %v1646
        %v1794 = vsel %vm771, %v1761, %v1647
        %v1795 = vsel %vm772, %v1765, %v1648
        %v1796 = vsel %vm773, %v1761, %v1649
        %v1797 = vsel %vm774, %v1765, %v1650
        %v1798 = vsel %vm775, %v1761, %v1651
        %v1799 = vsel %vm776, %v1765, %v1652
        %v1800 = vsel %vm777, %v1761, %v1653
        %v1801 = vsel %vm778, %v1765, %v1654
        %v1802 = vsel %vm779, %v1761, %v1655
        %v1803 = vsel %vm780, %v1765, %v1656
        %v1804 = vsel %vm781, %v1761, %v1657
        %v1805 = vsel %vm782, %v1765, %v1658
        %v1806 = vsel %vm783, %v1761, %v1659
        %v1807 = vsel %vm784, %v1765, %v1660
        %v1808 = vsel %vm785, %v1761, %v1661
        %v1809 = vsel %vm786, %v1765, %v1662
        %v1810 = vsel %vm787, %v1761, %v1663
        %v1811 = vsel %vm788, %v1765, %v1664
        %v1812 = vsel %vm789, %v1761, %v1665
        %v1813 = vsel %vm790, %v1765, %v1666
        %v1814 = vsel %vm791, %v1761, %v1667
        %v1815 = vsel %vm792, %v1765, %v1668
        %v1816 = vsel %vm793, %v1761, %v1669
        %v1817 = vsel %vm794, %v1765, %v1670
        %v1818 = vsel %vm795, %v1761, %v1671
        %v1819 = vsel %vm796, %v1765, %v1672
        %v1820 = vsel %vm797, %v1761, %v1673
        %v1821 = vsel %vm798, %v1765, %v1674
        %v1822 = vsel %vm799, %v1761, %v1675
        %v1823 = vsel %vm800, %v1765, %v1676
        %v1824 = vsel %vm801, %v1761, %v1677
        %v1825 = vsel %vm802, %v1765, %v1678
        %v1826 = vsel %vm803, %v1761, %v1679
        %v1827 = vsel %vm804, %v1765, %v1680
        %v1828 = vsel %vm805, %v1761, %v1681
        %v1829 = vsel %vm806, %v1765, %v1682
        %v1830 = vsel %vm807, %v1761, %v1683
        %v1831 = vsel %vm808, %v1765, %v1684
        %v1832 = vsel %vm809, %v1761, %v1685
        %v1833 = vsel %vm810, %v1765, %v1686
        %v1834 = vsel %vm811, %v1761, %v1687
        %v1835 = vsel %vm812, %v1765, %v1688
        %v1836 = vsel %vm813, %v1761, %v1689
        %v1837 = vsel %vm814, %v1765, %v1690
        %v1838 = vsel %vm815, %v1761, %v1691
        %v1839 = vsel %vm816, %v1765, %v1692
        %v1840 = vsel %vm817, %v1761, %v1693
        %v1841 = vsel %vm818, %v1765, %v1694
        %v1842 = vsel %vm819, %v1761, %v1695
        %v1843 = vsel %vm820, %v1765, %v1696
        %v1844 = vsel %vm821, %v1761, %v1697
        %v1845 = vsel %vm822, %v1765, %v1698
        %v1846 = vsel %vm823, %v1761, %v1699
        %v1847 = vsel %vm824, %v1765, %v1700
        %v1848 = vsel %vm825, %v1761, %v1701
        %v1849 = vsel %vm826, %v1765, %v1702
        %v1850 = vsel %vm827, %v1761, %v1703
        %v1851 = vsel %vm828, %v1765, %v1704
        %v1852 = vsel %vm829, %v1761, %v1705
        %v1853 = vsel %vm830, %v1765, %v1706
        %v1854 = vsel %vm831, %v1761, %v1707
        %v1855 = vsel %vm832, %v1765, %v1708
        %v1856 = vsel %vm833, %v1761, %v1709
        %v1857 = vsel %vm834, %v1765, %v1710
        %v1858 = vsel %vm835, %v1761, %v1711
        %v1859 = vsel %vm836, %v1765, %v1712
        %v1860 = vsel %vm837, %v1761, %v1713
        %v1861 = vsel %vm838, %v1765, %v1714
        %v1862 = vsel %vm839, %v1761, %v1715
        %v1863 = vsel %vm840, %v1765, %v1716
        %v1864 = vsel %vm841, %v1761, %v1717
        %v1865 = vsel %vm842, %v1765, %v1718
        %v1866 = vsel %vm843, %v1761, %v1719
        %v1867 = vsel %vm844, %v1765, %v1720
        %v1868 = vsel %vm845, %v1761, %v1721
        %v1869 = vsel %vm846, %v1765, %v1722
        %v1870 = vsel %vm847, %v1761, %v1723
        %v1871 = vsel %vm848, %v1765, %v1724
        %v1872 = vsel %vm849, %v1761, %v1725
        %v1873 = vsel %vm850, %v1765, %v1726
        %v1874 = vsel %vm851, %v1761, %v1727
        %v1875 = vsel %vm852, %v1765, %v1728
        %v1876 = vsel %vm853, %v1761, %v1729
        %v1877 = vsel %vm854, %v1765, %v1730
        %v1878 = vsel %vm855, %v1761, %v1731
        %v1879 = vsel %vm856, %v1765, %v1732
        %v1880 = vsel %vm857, %v1761, %v1733
        %v1881 = vsel %vm858, %v1765, %v1734
        %v1882 = vsel %vm859, %v1761, %v1735
        %v1883 = vsel %vm860, %v1765, %v1736
        %v1884 = vsel %vm861, %v1761, %v1737
        %v1885 = vsel %vm862, %v1765, %v1738
        %v1886 = vsel %vm863, %v1761, %v1739
        %v1887 = vsel %vm864, %v1765, %v1740
        %v1888 = vsel %vm865, %v1761, %v1741
        %v1889 = vsel %vm866, %v1765, %v1742
        %v1890 = vsel %vm867, %v1761, %v1743
        %v1891 = vsel %vm868, %v1765, %v1744
        %v1892 = vsel %vm869, %v1761, %v1745
        %v1893 = vsel %vm870, %v1765, %v1746
        %v1894 = vpack.c.bf16 %v1768, %v1766
        %v1895 = vpack.c.bf16 %v1769, %v1767
        %v1896 = vpack.c.bf16 %v1772, %v1770
        %v1897 = vpack.c.bf16 %v1773, %v1771
        %v1898 = vpack.c.bf16 %v1776, %v1774
        %v1899 = vpack.c.bf16 %v1777, %v1775
        %v1900 = vpack.c.bf16 %v1780, %v1778
        %v1901 = vpack.c.bf16 %v1781, %v1779
        %v1902 = vpack.c.bf16 %v1784, %v1782
        %v1903 = vpack.c.bf16 %v1785, %v1783
        %v1904 = vpack.c.bf16 %v1788, %v1786
        %v1905 = vpack.c.bf16 %v1789, %v1787
        %v1906 = vpack.c.bf16 %v1792, %v1790
        %v1907 = vpack.c.bf16 %v1793, %v1791
        %v1908 = vpack.c.bf16 %v1796, %v1794
        %v1909 = vpack.c.bf16 %v1797, %v1795
        %v1910 = vpack.c.bf16 %v1800, %v1798
        %v1911 = vpack.c.bf16 %v1801, %v1799
        %v1912 = vpack.c.bf16 %v1804, %v1802
        %v1913 = vpack.c.bf16 %v1805, %v1803
        %v1914 = vpack.c.bf16 %v1808, %v1806
        %v1915 = vpack.c.bf16 %v1809, %v1807
        %v1916 = vpack.c.bf16 %v1812, %v1810
        %v1917 = vpack.c.bf16 %v1813, %v1811
        %v1918 = vpack.c.bf16 %v1816, %v1814
        %v1919 = vpack.c.bf16 %v1817, %v1815
        %v1920 = vpack.c.bf16 %v1820, %v1818
        %v1921 = vpack.c.bf16 %v1821, %v1819
        %v1922 = vpack.c.bf16 %v1824, %v1822
        %v1923 = vpack.c.bf16 %v1825, %v1823
        %v1924 = vpack.c.bf16 %v1828, %v1826
        %v1925 = vpack.c.bf16 %v1829, %v1827
        %v1926 = vpack.c.bf16 %v1832, %v1830
        %v1927 = vpack.c.bf16 %v1833, %v1831
        %v1928 = vpack.c.bf16 %v1836, %v1834
        %v1929 = vpack.c.bf16 %v1837, %v1835
        %v1930 = vpack.c.bf16 %v1840, %v1838
        %v1931 = vpack.c.bf16 %v1841, %v1839
        %v1932 = vpack.c.bf16 %v1844, %v1842
        %v1933 = vpack.c.bf16 %v1845, %v1843
        %v1934 = vpack.c.bf16 %v1848, %v1846
        %v1935 = vpack.c.bf16 %v1849, %v1847
        %v1936 = vpack.c.bf16 %v1852, %v1850
        %v1937 = vpack.c.bf16 %v1853, %v1851
        %v1938 = vpack.c.bf16 %v1856, %v1854
        %v1939 = vpack.c.bf16 %v1857, %v1855
        %v1940 = vpack.c.bf16 %v1860, %v1858
        %v1941 = vpack.c.bf16 %v1861, %v1859
        %v1942 = vpack.c.bf16 %v1864, %v1862
        %v1943 = vpack.c.bf16 %v1865, %v1863
        %v1944 = vpack.c.bf16 %v1868, %v1866
        %v1945 = vpack.c.bf16 %v1869, %v1867
        %v1946 = vpack.c.bf16 %v1872, %v1870
        %v1947 = vpack.c.bf16 %v1873, %v1871
        %v1948 = vpack.c.bf16 %v1876, %v1874
        %v1949 = vpack.c.bf16 %v1877, %v1875
        %v1950 = vpack.c.bf16 %v1880, %v1878
        %v1951 = vpack.c.bf16 %v1881, %v1879
        %v1952 = vpack.c.bf16 %v1884, %v1882
        %v1953 = vpack.c.bf16 %v1885, %v1883
        %v1954 = vpack.c.bf16 %v1888, %v1886
        %v1955 = vpack.c.bf16 %v1889, %v1887
        %v1956 = vpack.c.bf16 %v1892, %v1890
        %v1957 = vpack.c.bf16 %v1893, %v1891
        %v1958 = vld [vmem:[%s396] sm:$0xff]
        %v1960 = vcombine.high %v1958, %v1958
        %v1962 = vunpack.c.l.s4 1983009808
        %v1963 = vunpack.c.0.s8 %v1962
        %v1964 = vlaneseq
        %v1965 = vshrl.u32 %v1964, 7
        %v1966 = vsub.s32 %v1963, %v1965
        %v1967 = vrot.slane %v1958, %v1966
        %v1969 = vunpack.c.l.s4 1983009808
        %v1970 = vunpack.c.0.s8 %v1969
        %v1971 = vlaneseq
        %v1972 = vshrl.u32 %v1971, 7
        %v1973 = vsub.s32 %v1970, %v1972
        %v1974 = vrot.slane %v1960, %v1973
        %v1975 = vcombine.high %v1967, %v1967
        %v1976 = vcombine.high %v1974, %v1974
        %1981 = vmatprep.subr.bf16.mxu0 %v1909
        %1982 = vmatpush1.bf16.msra.mxu0 %v1908
        %1983 = vmatprep.subr.bf16.mxu0 %v1907
        %1984 = vmatpush1.bf16.msra.mxu0 %v1906
        %1985 = vmatprep.subr.bf16.mxu0 %v1905
        %1986 = vmatpush1.bf16.msra.mxu0 %v1904
        %1987 = vmatprep.subr.bf16.mxu0 %v1903
        %1988 = vmatpush1.bf16.msra.mxu0 %v1902
        %1989 = vmatprep.subr.bf16.mxu0 %v1901
        %1990 = vmatpush1.bf16.msra.mxu0 %v1900
        %1991 = vmatprep.subr.bf16.mxu0 %v1899
        %1992 = vmatpush1.bf16.msra.mxu0 %v1898
        %1993 = vmatprep.subr.bf16.mxu0 %v1897
        %1994 = vmatpush1.bf16.msra.mxu0 %v1896
        %1995 = vmatprep.subr.bf16.mxu0 %v1895
        %1996 = vmatpush1.bf16.msra.mxu0 %v1894
        %1997 = vmatprep.subr.bf16.mxu0 %v1925
        %1998 = vmatpush2.bf16.msra.mxu0 %v1924
        %1999 = vmatprep.subr.bf16.mxu0 %v1923
        %2000 = vmatpush2.bf16.msra.mxu0 %v1922
        %2001 = vmatprep.subr.bf16.mxu0 %v1921
        %2002 = vmatpush2.bf16.msra.mxu0 %v1920
        %2003 = vmatprep.subr.bf16.mxu0 %v1919
        %2004 = vmatpush2.bf16.msra.mxu0 %v1918
        %2005 = vmatprep.subr.bf16.mxu0 %v1917
        %2006 = vmatpush2.bf16.msra.mxu0 %v1916
        %2007 = vmatprep.subr.bf16.mxu0 %v1915
        %2008 = vmatpush2.bf16.msra.mxu0 %v1914
        %2009 = vmatprep.subr.bf16.mxu0 %v1913
        %2010 = vmatpush2.bf16.msra.mxu0 %v1912
        %2011 = vmatprep.subr.bf16.mxu0 %v1911
        %2012 = vmatpush2.bf16.msra.mxu0 %v1910
        %2013 = vmatprep.mubr.bf16.mxu0 %v1975
        %2014 = vmatmul.mubr.bf16.gmra.mxu0 %v1967
        %v2015 = vpop.f32.mrf.mxu0
        %v2016 = vadd.f32 0.0, %v2015
        %v2017 = vpop.f32.mrf.mxu0
        %v2018 = vadd.f32 0.0, %v2017
        %v2019 = vpop.f32.mrf.mxu0
        %v2020 = vpop.f32.mrf.mxu0
        %2021 = vdwg.mxu0
        %2022 = vmatprep.subr.bf16.mxu0 %v1941
        %2023 = vmatpush1.bf16.msra.mxu0 %v1940
        %2024 = vmatprep.subr.bf16.mxu0 %v1939
        %2025 = vmatpush1.bf16.msra.mxu0 %v1938
        %2026 = vmatprep.subr.bf16.mxu0 %v1937
        %2027 = vmatpush1.bf16.msra.mxu0 %v1936
        %2028 = vmatprep.subr.bf16.mxu0 %v1935
        %2029 = vmatpush1.bf16.msra.mxu0 %v1934
        %2030 = vmatprep.subr.bf16.mxu0 %v1933
        %2031 = vmatpush1.bf16.msra.mxu0 %v1932
        %2032 = vmatprep.subr.bf16.mxu0 %v1931
        %2033 = vmatpush1.bf16.msra.mxu0 %v1930
        %2034 = vmatprep.subr.bf16.mxu0 %v1929
        %2035 = vmatpush1.bf16.msra.mxu0 %v1928
        %2036 = vmatprep.subr.bf16.mxu0 %v1927
        %2037 = vmatpush1.bf16.msra.mxu0 %v1926
        %2038 = vmatprep.subr.bf16.mxu0 %v1957
        %2039 = vmatpush2.bf16.msra.mxu0 %v1956
        %2040 = vmatprep.subr.bf16.mxu0 %v1955
        %2041 = vmatpush2.bf16.msra.mxu0 %v1954
        %2042 = vmatprep.subr.bf16.mxu0 %v1953
        %2043 = vmatpush2.bf16.msra.mxu0 %v1952
        %2044 = vmatprep.subr.bf16.mxu0 %v1951
        %2045 = vmatpush2.bf16.msra.mxu0 %v1950
        %2046 = vmatprep.subr.bf16.mxu0 %v1949
        %2047 = vmatpush2.bf16.msra.mxu0 %v1948
        %2048 = vmatprep.subr.bf16.mxu0 %v1947
        %2049 = vmatpush2.bf16.msra.mxu0 %v1946
        %2050 = vmatprep.subr.bf16.mxu0 %v1945
        %2051 = vmatpush2.bf16.msra.mxu0 %v1944
        %2052 = vmatprep.subr.bf16.mxu0 %v1943
        %2053 = vmatpush2.bf16.msra.mxu0 %v1942
        %2054 = vmatprep.mubr.bf16.mxu0 %v1976
        %2055 = vmatmul.mubr.bf16.gmra.mxu0 %v1974
        %v2056 = vpop.f32.mrf.mxu0
        %v2057 = vadd.f32 %v2016, %v2056
        %v2058 = vpop.f32.mrf.mxu0
        %v2059 = vadd.f32 %v2018, %v2058
        %v2060 = vpop.f32.mrf.mxu0
        %v2061 = vpop.f32.mrf.mxu0
        %2062 = vdwg.mxu0
        %v2063 = vld [vmem:[%s364] sm:$0x77]
        %v2066 = vcombine.low %v2057, %v2059
        %v2068 = vsub.f32 %v2063, %v2066
        %v2069 = vand.u32 2147483647, %v2068
        %v2070 = vld [vmem:[%s386] sm:$0x3]
        %v2072 = vlaneseq
        %v2073 = vshrl.u32 %v2072, 7
        %v2074 = vsub.s32 0, %v2073
        %v2075 = vrot.slane %v2070, %v2074
        %v2076 = vlaneseq
        %v2077 = vshrl.u32 %v2076, 7
        %v2078 = vsub.s32 1, %v2077
        %v2079 = vrot.slane %v2070, %v2078
        %v2080 = vcombine.low %v2075, %v2079
        %v2082 = vmul.f32 %v2069, %v2080
        %v2083 = vld [vmem:[%s355] sm:$0xff]
        %v2085 = vcombine.high %v2082, %v2082
        %vm2087 = vcmask 1042432
        %v2088 = vsel %vm2087, %v2082, 0.0
        %v2089 = vsel %vm2087, %v2085, 0.0
        %v2090 = vadd.f32 %v2088, %v2089
        %2091 = vadd.xlane.f32.xlu0 %v2090
        %v2092 = vpop.xlane.xlu0 %2091
        %v2093 = vrot.slane %v2092, 4
        %v2094 = vadd.f32 %v2092, %v2093
        %v2095 = vrot.slane %v2094, 2
        %v2096 = vadd.f32 %v2094, %v2095
        %v2097 = vrot.slane %v2096, 1
        %v2098 = vadd.f32 %v2096, %v2097
        %s2099 = vtos %v2098
        %s2100 = smul.f32 %s2099, 0.00032552084
        %v2101 = vstv %s2100
        %v2102 = vadd.f32 %v2083, %v2101
        %2103 = vst [vmem:[%s355] sm:$0xff] %v2102
        %s2104 = sand.u32 %s195, 1
        %s2105 = scalar_lea.sflag [#allocation5], %s2104
        %s2106 = sand.u32 %s195, 1
        %s2107 = smul.addr %s2106, 8
        %s2108 = scalar_lea.vmem [#allocation4], %s2107
        // Predicated region
        $region45: #{tpu_custom_call.1} parent=39 // pred_check
          %p2109 = pneg %p205
        $region46: #{tpu_custom_call.1} parent=39 // pred_check_branch
          %2111 = sbr.rel (%p2109) target = $region48
        $region47: #{tpu_custom_call.1} parent=39 // pred_region
          %s2113 = ssub.s32 128, 128
          %2114 = vsyncadd %s2105, %s2113
          %s2115 = smul.addr %s31, 2
          %s2116 = sadd.s32 %s32, %s2115
          %s2117 = smul.addr %s2116, 128
          %s2118 = scalar_lea.hbm %s6, %s2117
          %s2120 = sshll.u32 %s2108, 4
          %s2121 = int_to_ptr.vmem [resolvable:$true] %s2120
          %2123 = dma.vmem_to_hbm [thread:$0]  %s2121, 128, %s2118, %s2105
        $region48: #{tpu_custom_call.1} parent=39 // pred_fallthru
          _
      $region40: #{tpu_custom_call.1} parent=5 // pred_fallthru
        _
      %p2124 = scmp.le.s32.totalorder 2, %s21
      // Predicated region
      $region49: #{tpu_custom_call.1} parent=5 // pred_check
        %p2125 = pneg %p2124
      $region50: #{tpu_custom_call.1} parent=5 // pred_check_branch
        %2127 = sbr.rel (%p2125) target = $region52
      $region51: #{tpu_custom_call.1} parent=5 // pred_region
        %s2128 = ssub.s32 %s21, 2
        // Predicated region
        $region53: #{tpu_custom_call.1} parent=51 // pred_check
          %p2129 = pneg %p211
        $region54: #{tpu_custom_call.1} parent=51 // pred_check_branch
          %2131 = sbr.rel (%p2129) target = $region56
        $region55: #{tpu_custom_call.1} parent=51 // pred_region
          %s2132 = sand.u32 %s196, 1
          %s2133 = scalar_lea.sflag [#allocation5], %s2132
          %s2134 = sand.u32 %s196, 1
          %s2135 = smul.addr %s2134, 8
          %s2136 = scalar_lea.vmem [#allocation4], %s2135
          %2137 = dma.done %s2133, 128
        $region56: #{tpu_custom_call.1} parent=51 // pred_fallthru
          _
      $region52: #{tpu_custom_call.1} parent=5 // pred_fallthru
        _
    $region6: #{tpu_custom_call.1} parent=1 // loop_footer
      %s25 = sadd.s32 1, %s21
    $region7: #{tpu_custom_call.1} parent=1 // loop_footer_branch
      %20 = sbr.rel target = $region3
    $region8: #{tpu_custom_call.1} parent=1 // loop_exit
      _
    %2138 = vsyncpa [#allocation5], 1
    %s2139 = scalar_lea.sflag [#allocation5], 1
    %2140 = vsyncpa %s2139, 1

</llo_original>
